<compile_context>
chip_gen: v5e
topology: v5e:2x2
jax: 0.10.0
libtpu: 0.0.40
codegen_flags: <defaults>
</compile_context>

<pallas_src>
import jax
import jax.numpy as jnp
import numpy as np
from jax.experimental import pallas as pl
from jax.experimental.pallas import tpu as pltpu


def longconv_kernel(u_ref, toe_ref, d_ref, w_ref, b_ref, o_ref):
    """One grid step == one batch element; everything resident in VMEM.

    u_ref   : (1, H, L)   input slice for this batch element
    toe_ref : (H, L, L)   toe[h, s, l] = k_soft[h, (l - s) mod 2L]
    d_ref   : (H, 1)      skip parameter D
    w_ref   : (2H, H)     output Linear weight
    b_ref   : (2H, 1)     output Linear bias
    o_ref   : (1, H, L)   output slice
    """
    u = u_ref[0]                                   # (H, L)
    H = u.shape[0]

    # Depthwise circular conv (first L output taps kept):
    #   y[h, l] = sum_s u[h, s] * toe[h, s, l]
    # At these toy sizes (H*L*L = 8K MACs) a VPU broadcast-multiply + sublane
    # reduce beats driving the MXU with M=1 per-channel matmuls.
    # TODO(synk): at production B/H/L switch to a batched MXU dot_general
    # ('bhs,hsl->bhl', B on the M dim) and block the grid over H / L.
    y = jnp.sum(u[:, :, None] * toe_ref[...], axis=1)            # (H, L)

    # skip connection: y += u * D  (D broadcast over L)
    y = y + u * d_ref[...]

    # GELU, tanh approximation -> EUP (separate VLIW slot)
    y = jax.nn.gelu(y, approximate=True)

    # Output Linear over channels, kept in channels-first layout:
    #   z[g, l] = sum_h W[g, h] * y[h, l] + bias[g]     (M = 2H, K = H, N = L)
    z = jnp.dot(w_ref[...], y, preferred_element_type=jnp.float32) + b_ref[...]

    # GLU along the feature dim; halves are sublane-aligned slices, and the
    # product is already in the (H, L) output layout.
    o_ref[0] = (z[:H, :] * jax.nn.sigmoid(z[H:, :])).astype(o_ref.dtype)


def prepare_longconv_weights(kernel, D, W, bias, *, kernel_lam=0.1):
    """Batch-invariant weight preprocessing (call ONCE at weight-load time).

    kernel: (1, H, 2L); D: (1, H); W: (2H, H); bias: (2H,).
    Returns the compact factors consumed by the Pallas kernel.
    """
    C, H, L2 = kernel.shape
    assert C == 1, "channels > 1 not implemented"
    L = L2 // 2
    k = kernel[0]                                                      # (H, 2L)
    # soft threshold: relu(|k| - lam) * sign(k)
    k_soft = jnp.maximum(jnp.abs(k) - kernel_lam, 0.0) * jnp.sign(k)
    # TODO(synk): kernel_drop / dropout are identity in eval mode; not implemented.
    # per-channel circular-conv factor: toe[h, s, l] = k_soft[h, (l - s) mod 2L]
    idx = (jnp.arange(L)[None, :] - jnp.arange(L)[:, None]) % (2 * L)  # (s, l)
    toe = k_soft[:, idx]                                               # (H, L, L)
    d = D[0].reshape(H, 1)                                             # (H, 1)
    b = bias.reshape(2 * H, 1)                                         # (2H, 1)
    return toe, d, W, b


def long_conv_forward(u, weights):
    """u: (B, H, L); weights: output of prepare_longconv_weights."""
    toe, d, W, b = weights
    B, H, L = u.shape
    assert toe.shape == (H, L, L)

    return pl.pallas_call(
        longconv_kernel,
        out_shape=jax.ShapeDtypeStruct((B, H, L), jnp.float32),
        grid=(B,),
        in_specs=[
            pl.BlockSpec((1, H, L), lambda i: (i, 0, 0)),      # u: one batch element / step
            pl.BlockSpec((H, L, L), lambda i: (0, 0, 0)),      # toe (resident across steps)
            pl.BlockSpec((H, 1), lambda i: (0, 0)),            # D
            pl.BlockSpec((2 * H, H), lambda i: (0, 0)),        # W
            pl.BlockSpec((2 * H, 1), lambda i: (0, 0)),        # bias
        ],
        out_specs=pl.BlockSpec((1, H, L), lambda i: (i, 0, 0)),
        compiler_params=pltpu.CompilerParams(
            # batch steps are independent -> shard across TensorCores on v7x
            dimension_semantics=("parallel",),
            # compact weights need only ~50 KiB; stay well under v7x's 64 MiB/TC
            vmem_limit_bytes=32 * 1024 * 1024,
        ),
    )(u, toe, d, W, b)


def long_conv_reference(u, kernel, D, W, bias, *, kernel_lam=0.1):
    """Pure-JAX reference mirroring the PyTorch forward (eval mode)."""
    B, H, L = u.shape
    k = jnp.maximum(jnp.abs(kernel) - kernel_lam, 0.0) * jnp.sign(kernel)
    k2 = k[0]                                                   # (H, 2L)
    u_f = jnp.fft.rfft(u, n=2 * L, axis=-1)
    k_f = jnp.fft.rfft(k2, n=2 * L, axis=-1)
    y = jnp.fft.irfft(u_f * k_f[None], n=2 * L, axis=-1)[..., :L]
    y = y + u * D[0][None, :, None]
    y = jax.nn.gelu(y, approximate=False)
    yT = jnp.swapaxes(y, -1, -2)                                # (B, L, H)
    z = yT @ W.T + bias                                         # (B, L, 2H)
    z = z[..., :H] * jax.nn.sigmoid(z[..., H:])                 # GLU
    return jnp.swapaxes(z, -1, -2)                              # (B, H, L)


if __name__ == "__main__":
    B, H, L, channels = 2, 32, 16, 1

    key = jax.random.PRNGKey(0)
    k_d, k_k, k_w, k_b, k_u = jax.random.split(key, 5)

    # Parameter shapes from LongConv.__init__ (channels=1, self.L = 2*L).
    D = jax.random.normal(k_d, (channels, H), dtype=jnp.float32)
    # torch init is randn*0.002; scaled up so the soft-threshold (lam=0.1) keeps some taps.
    kernel = jax.random.normal(k_k, (channels, H, 2 * L), dtype=jnp.float32) * 0.2
    W = jax.random.normal(k_w, (2 * H, channels * H), dtype=jnp.float32) / np.sqrt(channels * H)
    bias = jax.random.normal(k_b, (2 * H,), dtype=jnp.float32) * 0.01
    u = jax.random.normal(k_u, (B, H, L), dtype=jnp.float32)

    # Weight preprocessing happens once, off the per-call path.
    weights = prepare_longconv_weights(kernel, D, W, bias, kernel_lam=0.1)

    out = long_conv_forward(u, weights)
    out = jax.block_until_ready(out)

    ref = long_conv_reference(u, kernel, D, W, bias, kernel_lam=0.1)
    assert out.shape == (B, H, L)
    # tanh-GELU and default-precision MXU matmul -> modest tolerance.
    np.testing.assert_allclose(np.asarray(out), np.asarray(ref), rtol=2e-2, atol=2e-2)

    print("KERNEL_OK")
</pallas_src>

<mosaic_0001>
module attributes {stable_mosaic.version = 11 : i64} {
  func.func @longconv_kernel(%arg0: i32, %arg1: memref<1x32x16xf32, #tpu.memory_space<vmem>>, %arg2: memref<32x16x16xf32, #tpu.memory_space<vmem>>, %arg3: memref<32x1xf32, #tpu.memory_space<vmem>>, %arg4: memref<64x32xf32, #tpu.memory_space<vmem>>, %arg5: memref<64x1xf32, #tpu.memory_space<vmem>>, %arg6: memref<1x32x16xf32, #tpu.memory_space<vmem>>) attributes {dimension_semantics = [#tpu.dimension_semantics<parallel>], iteration_bounds = array<i64: 2>, scalar_prefetch = 0 : i64, scratch_operands = 0 : i64, tpu.core_type = #tpu.core_type<tc>, window_params = [{transform_indices = @transform_0, window_bounds = array<i64: 1, 32, 16>}, {pipeline_mode = #tpu.pipeline_mode<synchronous>, transform_indices = @transform_1, window_bounds = array<i64: 32, 16, 16>}, {pipeline_mode = #tpu.pipeline_mode<synchronous>, transform_indices = @transform_2, window_bounds = array<i64: 32, 1>}, {pipeline_mode = #tpu.pipeline_mode<synchronous>, transform_indices = @transform_3, window_bounds = array<i64: 64, 32>}, {pipeline_mode = #tpu.pipeline_mode<synchronous>, transform_indices = @transform_4, window_bounds = array<i64: 64, 1>}, {transform_indices = @transform_5, window_bounds = array<i64: 1, 32, 16>}]} {
    %c0 = arith.constant 0 : index
    %c0_0 = arith.constant 0 : index
    %c0_1 = arith.constant 0 : index
    %0 = vector.load %arg1[%c0, %c0_0, %c0_1] : memref<1x32x16xf32, #tpu.memory_space<vmem>>, vector<1x32x16xf32>
    %1 = vector.shape_cast %0 : vector<1x32x16xf32> to vector<32x16xf32>
    %2 = vector.shape_cast %1 : vector<32x16xf32> to vector<32x16x1xf32>
    %c0_2 = arith.constant 0 : index
    %c0_3 = arith.constant 0 : index
    %c0_4 = arith.constant 0 : index
    %3 = vector.load %arg2[%c0_2, %c0_3, %c0_4] : memref<32x16x16xf32, #tpu.memory_space<vmem>>, vector<32x16x16xf32>
    %4 = vector.broadcast %2 : vector<32x16x1xf32> to vector<32x16x16xf32>
    %5 = arith.mulf %4, %3 : vector<32x16x16xf32>
    %cst = arith.constant dense<0.000000e+00> : vector<32x16xf32>
    %6 = vector.multi_reduction <add>, %5, %cst [1] : vector<32x16x16xf32> to vector<32x16xf32>
    %c0_5 = arith.constant 0 : index
    %c0_6 = arith.constant 0 : index
    %7 = vector.load %arg3[%c0_5, %c0_6] : memref<32x1xf32, #tpu.memory_space<vmem>>, vector<32x1xf32>
    %8 = vector.broadcast %7 : vector<32x1xf32> to vector<32x16xf32>
    %9 = arith.mulf %1, %8 : vector<32x16xf32>
    %10 = arith.addf %6, %9 : vector<32x16xf32>
    %11 = arith.mulf %10, %10 : vector<32x16xf32>
    %12 = arith.mulf %10, %11 : vector<32x16xf32>
    %cst_7 = arith.constant 4.471500e-02 : f32
    %13 = vector.broadcast %cst_7 : f32 to vector<32x16xf32>
    %14 = arith.mulf %13, %12 : vector<32x16xf32>
    %15 = arith.addf %10, %14 : vector<32x16xf32>
    %cst_8 = arith.constant 0.797884583 : f32
    %16 = vector.broadcast %cst_8 : f32 to vector<32x16xf32>
    %17 = arith.mulf %16, %15 : vector<32x16xf32>
    %18 = math.tanh %17 : vector<32x16xf32>
    %cst_9 = arith.constant 1.000000e+00 : f32
    %19 = vector.broadcast %cst_9 : f32 to vector<32x16xf32>
    %20 = arith.addf %19, %18 : vector<32x16xf32>
    %cst_10 = arith.constant 5.000000e-01 : f32
    %21 = vector.broadcast %cst_10 : f32 to vector<32x16xf32>
    %22 = arith.mulf %21, %20 : vector<32x16xf32>
    %23 = arith.mulf %10, %22 : vector<32x16xf32>
    %c0_11 = arith.constant 0 : index
    %c0_12 = arith.constant 0 : index
    %24 = vector.load %arg4[%c0_11, %c0_12] : memref<64x32xf32, #tpu.memory_space<vmem>>, vector<64x32xf32>
    %cst_13 = arith.constant dense<0.000000e+00> : vector<64x16xf32>
    %25 = tpu.matmul %24, %23, %cst_13 {dimension_numbers = #tpu.dot_dimension_numbers<[1], [0], [0], [1], [0, 0, 1, 1], [], []>} : vector<64x32xf32>, vector<32x16xf32>, vector<64x16xf32> -> vector<64x16xf32>
    %c0_14 = arith.constant 0 : index
    %c0_15 = arith.constant 0 : index
    %26 = vector.load %arg5[%c0_14, %c0_15] : memref<64x1xf32, #tpu.memory_space<vmem>>, vector<64x1xf32>
    %27 = vector.broadcast %26 : vector<64x1xf32> to vector<64x16xf32>
    %28 = arith.addf %25, %27 : vector<64x16xf32>
    %29 = vector.extract_strided_slice %28 {offsets = [0, 0], sizes = [32, 16], strides = [1, 1]} : vector<64x16xf32> to vector<32x16xf32>
    %30 = vector.extract_strided_slice %28 {offsets = [32, 0], sizes = [32, 16], strides = [1, 1]} : vector<64x16xf32> to vector<32x16xf32>
    %31 = arith.negf %30 : vector<32x16xf32>
    %32 = math.exp %31 : vector<32x16xf32>
    %cst_16 = arith.constant 1.000000e+00 : f32
    %33 = vector.broadcast %cst_16 : f32 to vector<32x16xf32>
    %34 = arith.addf %33, %32 : vector<32x16xf32>
    %35 = arith.divf %33, %34 : vector<32x16xf32>
    %36 = arith.mulf %29, %35 : vector<32x16xf32>
    %c0_17 = arith.constant 0 : index
    %c0_18 = arith.constant 0 : index
    %c0_19 = arith.constant 0 : index
    %37 = vector.load %arg6[%c0_17, %c0_18, %c0_19] : memref<1x32x16xf32, #tpu.memory_space<vmem>>, vector<1x32x16xf32>
    %38 = vector.shape_cast %37 : vector<1x32x16xf32> to vector<32x16xf32>
    %39 = vector.shape_cast %36 : vector<32x16xf32> to vector<1x32x16xf32>
    tpu.vector_store %arg6[%c0_17, %c0_18, %c0_19], %39 {strides = array<i32>} : memref<1x32x16xf32, #tpu.memory_space<vmem>>, vector<1x32x16xf32>,
    return
  }
  func.func @transform_0(%arg0: i32) -> (i32, i32, i32) {
    %c0_i32 = arith.constant 0 : i32
    %c0_i32_0 = arith.constant 0 : i32
    %c0_i32_1 = arith.constant 0 : i32
    return %arg0, %c0_i32, %c0_i32_0 : i32, i32, i32
  }
  func.func @transform_1(%arg0: i32) -> (i32, i32, i32) {
    %c0_i32 = arith.constant 0 : i32
    %c0_i32_0 = arith.constant 0 : i32
    %c0_i32_1 = arith.constant 0 : i32
    %c0_i32_2 = arith.constant 0 : i32
    return %c0_i32, %c0_i32_0, %c0_i32_1 : i32, i32, i32
  }
  func.func @transform_2(%arg0: i32) -> (i32, i32) {
    %c0_i32 = arith.constant 0 : i32
    %c0_i32_0 = arith.constant 0 : i32
    %c0_i32_1 = arith.constant 0 : i32
    return %c0_i32, %c0_i32_0 : i32, i32
  }
  func.func @transform_3(%arg0: i32) -> (i32, i32) {
    %c0_i32 = arith.constant 0 : i32
    %c0_i32_0 = arith.constant 0 : i32
    %c0_i32_1 = arith.constant 0 : i32
    return %c0_i32, %c0_i32_0 : i32, i32
  }
  func.func @transform_4(%arg0: i32) -> (i32, i32) {
    %c0_i32 = arith.constant 0 : i32
    %c0_i32_0 = arith.constant 0 : i32
    %c0_i32_1 = arith.constant 0 : i32
    return %c0_i32, %c0_i32_0 : i32, i32
  }
  func.func @transform_5(%arg0: i32) -> (i32, i32, i32) {
    %c0_i32 = arith.constant 0 : i32
    %c0_i32_0 = arith.constant 0 : i32
    %c0_i32_1 = arith.constant 0 : i32
    return %arg0, %c0_i32, %c0_i32_0 : i32, i32, i32
  }
}

</mosaic_0001>

<llo_original>
// kernel: tpu_custom_call.1
$region0: #{tpu_custom_call.1}
  #allocation0 [shape = 'u32[]', space=smem, size = 0x4, offset = 0x4, fixed_abs, tag = 'smem constant byte address 0x4 - core index']
  #allocation1 [shape = 'u32[72,128]{1,0:T(1,128)}', space=vmem, size = 0x9000, scoped, tag = 'internal scratch']
  %s0 = inlined_call_operand.vmem [shape: f32[2,32,16], index: 0, kind: input, shape index: {}]
  %s1 = inlined_call_operand.vmem [shape: f32[32,16,16], index: 1, kind: input, shape index: {}]
  %s2 = inlined_call_operand.vmem [shape: f32[32,1], index: 2, kind: input, shape index: {}]
  %s3 = inlined_call_operand.vmem [shape: f32[64,32], index: 3, kind: input, shape index: {}]
  %s4 = inlined_call_operand.vmem [shape: f32[64,1], index: 4, kind: input, shape index: {}]
  %s5 = inlined_call_operand.vmem [shape: f32[2,32,16], index: 5, kind: output, shape index: {}]
  %s6 = sld [smem:[#allocation0]]
  $region53: #{tpu_custom_call.1} parent=0
    _
  %s8 = ssub.s32 1, %s6
  %s9 = scalar_select 0, %s8, %s6
  loop: start=0, step=1, limit=4
  $region2: #{tpu_custom_call.1} parent=0 // loop_pre_header
    _
  $region3: #{tpu_custom_call.1} parent=0 // loop_header
    %s11 = sphi 0, %s15
    %p12 = scmp.ge.s32.totalorder %s11, 4
    %s21 = sphi 0, %s23
    %s24 = sphi 0, %s21
    %s25 = sphi 0, %s24
    %s41 = sphi 0, %s25
    %s45 = sphi 0, %s45
    %s47 = sphi 0, %s45
    %s48 = sphi 0, %s47
    %s62 = sphi 0, %s48
    %s66 = sphi 0, %s66
    %s68 = sphi 0, %s66
    %s69 = sphi 0, %s68
    %s83 = sphi 0, %s69
    %s87 = sphi 0, %s87
    %s89 = sphi 0, %s87
    %s90 = sphi 0, %s89
    %s104 = sphi 0, %s90
    %s108 = sphi 0, %s108
    %s110 = sphi 0, %s108
    %s111 = sphi 0, %s110
    %s125 = sphi 0, %s111
    %s131 = sphi 0, %s133
    %s134 = sphi 0, %s131
    %s135 = sphi 0, %s134
    %s151 = sphi 0, %s135
  $region4: #{tpu_custom_call.1} parent=0 // loop_header_branch
    %14 = sbr.rel (%p12) target = $region8
  $region5: #{tpu_custom_call.1} parent=0 // loop_body
    %s16 = ssub.s32 %s11, 1
    %s17 = ssub.s32 %s11, 2
    %s18 = sadd.s32 %s11, 1
    %s19 = ssub.s32 %s11, %s18
    %p20 = scmp.eq.s32.totalorder %s19, 0
    %s22 = sadd.s32 %s21, 1
    %s23 = scalar_select %p20, %s21, %s22
    %p26 = pneg %p20
    %p27 = scmp.eq.s32.totalorder %s11, 1
    %p28 = por %p26, %p27
    %p29 = scmp.ne.s32.totalorder %s21, %s24
    %p30 = scmp.eq.s32.totalorder %s11, 0
    %p31 = por %p29, %p30
    %p32 = scmp.ne.s32.totalorder %s21, %s24
    %p33 = scmp.eq.s32.totalorder %s16, 1
    %p34 = por %p32, %p33
    %p35 = scmp.ne.s32.totalorder %s24, %s25
    %p36 = scmp.eq.s32.totalorder %s16, 0
    %p37 = por %p35, %p36
    %p38 = scmp.ne.s32.totalorder %s24, %s25
    %p39 = scmp.eq.s32.totalorder %s17, 1
    %p40 = por %p38, %p39
    %p42 = scmp.ne.s32.totalorder %s25, %s41
    %p43 = scmp.eq.s32.totalorder %s17, 0
    %p44 = por %p42, %p43
    %s46 = sadd.s32 %s45, 1
    %p49 = scmp.eq.s32.totalorder %s11, 1
    %p50 = scmp.ne.s32.totalorder %s45, %s47
    %p51 = scmp.eq.s32.totalorder %s11, 0
    %p52 = por %p50, %p51
    %p53 = scmp.ne.s32.totalorder %s45, %s47
    %p54 = scmp.eq.s32.totalorder %s16, 1
    %p55 = por %p53, %p54
    %p56 = scmp.ne.s32.totalorder %s47, %s48
    %p57 = scmp.eq.s32.totalorder %s16, 0
    %p58 = por %p56, %p57
    %p59 = scmp.ne.s32.totalorder %s47, %s48
    %p60 = scmp.eq.s32.totalorder %s17, 1
    %p61 = por %p59, %p60
    %p63 = scmp.ne.s32.totalorder %s48, %s62
    %p64 = scmp.eq.s32.totalorder %s17, 0
    %p65 = por %p63, %p64
    %s67 = sadd.s32 %s66, 1
    %p70 = scmp.eq.s32.totalorder %s11, 1
    %p71 = scmp.ne.s32.totalorder %s66, %s68
    %p72 = scmp.eq.s32.totalorder %s11, 0
    %p73 = por %p71, %p72
    %p74 = scmp.ne.s32.totalorder %s66, %s68
    %p75 = scmp.eq.s32.totalorder %s16, 1
    %p76 = por %p74, %p75
    %p77 = scmp.ne.s32.totalorder %s68, %s69
    %p78 = scmp.eq.s32.totalorder %s16, 0
    %p79 = por %p77, %p78
    %p80 = scmp.ne.s32.totalorder %s68, %s69
    %p81 = scmp.eq.s32.totalorder %s17, 1
    %p82 = por %p80, %p81
    %p84 = scmp.ne.s32.totalorder %s69, %s83
    %p85 = scmp.eq.s32.totalorder %s17, 0
    %p86 = por %p84, %p85
    %s88 = sadd.s32 %s87, 1
    %p91 = scmp.eq.s32.totalorder %s11, 1
    %p92 = scmp.ne.s32.totalorder %s87, %s89
    %p93 = scmp.eq.s32.totalorder %s11, 0
    %p94 = por %p92, %p93
    %p95 = scmp.ne.s32.totalorder %s87, %s89
    %p96 = scmp.eq.s32.totalorder %s16, 1
    %p97 = por %p95, %p96
    %p98 = scmp.ne.s32.totalorder %s89, %s90
    %p99 = scmp.eq.s32.totalorder %s16, 0
    %p100 = por %p98, %p99
    %p101 = scmp.ne.s32.totalorder %s89, %s90
    %p102 = scmp.eq.s32.totalorder %s17, 1
    %p103 = por %p101, %p102
    %p105 = scmp.ne.s32.totalorder %s90, %s104
    %p106 = scmp.eq.s32.totalorder %s17, 0
    %p107 = por %p105, %p106
    %s109 = sadd.s32 %s108, 1
    %p112 = scmp.eq.s32.totalorder %s11, 1
    %p113 = scmp.ne.s32.totalorder %s108, %s110
    %p114 = scmp.eq.s32.totalorder %s11, 0
    %p115 = por %p113, %p114
    %p116 = scmp.ne.s32.totalorder %s108, %s110
    %p117 = scmp.eq.s32.totalorder %s16, 1
    %p118 = por %p116, %p117
    %p119 = scmp.ne.s32.totalorder %s110, %s111
    %p120 = scmp.eq.s32.totalorder %s16, 0
    %p121 = por %p119, %p120
    %p122 = scmp.ne.s32.totalorder %s110, %s111
    %p123 = scmp.eq.s32.totalorder %s17, 1
    %p124 = por %p122, %p123
    %p126 = scmp.ne.s32.totalorder %s111, %s125
    %p127 = scmp.eq.s32.totalorder %s17, 0
    %p128 = por %p126, %p127
    %s129 = ssub.s32 %s11, %s18
    %p130 = scmp.eq.s32.totalorder %s129, 0
    %s132 = sadd.s32 %s131, 1
    %s133 = scalar_select %p130, %s131, %s132
    %p136 = pneg %p130
    %p137 = scmp.eq.s32.totalorder %s11, 1
    %p138 = por %p136, %p137
    %p139 = scmp.ne.s32.totalorder %s131, %s134
    %p140 = scmp.eq.s32.totalorder %s11, 0
    %p141 = por %p139, %p140
    %p142 = scmp.ne.s32.totalorder %s131, %s134
    %p143 = scmp.eq.s32.totalorder %s16, 1
    %p144 = por %p142, %p143
    %p145 = scmp.ne.s32.totalorder %s134, %s135
    %p146 = scmp.eq.s32.totalorder %s16, 0
    %p147 = por %p145, %p146
    %p148 = scmp.ne.s32.totalorder %s134, %s135
    %p149 = scmp.eq.s32.totalorder %s17, 1
    %p150 = por %p148, %p149
    %p152 = scmp.ne.s32.totalorder %s135, %s151
    %p153 = scmp.eq.s32.totalorder %s17, 0
    %p154 = por %p152, %p153
    %p155 = scmp.le.s32.totalorder 1, %s11
    %p156 = scmp.lt.s32.totalorder %s11, 3
    %p157 = pnand %p155, %p156
    %p158 = pneg %p157
    // Predicated region
    $region9: #{tpu_custom_call.1} parent=5 // pred_check
      _
    $region10: #{tpu_custom_call.1} parent=5 // pred_check_branch
      %160 = sbr.rel (%p157) target = $region12
    $region11: #{tpu_custom_call.1} parent=5 // pred_region
      %s161 = ssub.s32 %s11, 1
      // Predicated region
      $region13: #{tpu_custom_call.1} parent=11 // pred_check
        %p162 = pneg %p58
      $region14: #{tpu_custom_call.1} parent=11 // pred_check_branch
        %164 = sbr.rel (%p162) target = $region16
      $region15: #{tpu_custom_call.1} parent=11 // pred_region
        _
      $region16: #{tpu_custom_call.1} parent=11 // pred_fallthru
        _
      // Predicated region
      $region17: #{tpu_custom_call.1} parent=11 // pred_check
        %p165 = pneg %p79
      $region18: #{tpu_custom_call.1} parent=11 // pred_check_branch
        %167 = sbr.rel (%p165) target = $region20
      $region19: #{tpu_custom_call.1} parent=11 // pred_region
        _
      $region20: #{tpu_custom_call.1} parent=11 // pred_fallthru
        _
      // Predicated region
      $region21: #{tpu_custom_call.1} parent=11 // pred_check
        %p168 = pneg %p100
      $region22: #{tpu_custom_call.1} parent=11 // pred_check_branch
        %170 = sbr.rel (%p168) target = $region24
      $region23: #{tpu_custom_call.1} parent=11 // pred_region
        _
      $region24: #{tpu_custom_call.1} parent=11 // pred_fallthru
        _
      // Predicated region
      $region25: #{tpu_custom_call.1} parent=11 // pred_check
        %p171 = pneg %p121
      $region26: #{tpu_custom_call.1} parent=11 // pred_check_branch
        %173 = sbr.rel (%p171) target = $region28
      $region27: #{tpu_custom_call.1} parent=11 // pred_region
        _
      $region28: #{tpu_custom_call.1} parent=11 // pred_fallthru
        _
    $region12: #{tpu_custom_call.1} parent=5 // pred_fallthru
      _
    %p174 = scmp.lt.s32.totalorder %s11, 2
    // Predicated region
    $region29: #{tpu_custom_call.1} parent=5 // pred_check
      %p175 = pneg %p174
    $region30: #{tpu_custom_call.1} parent=5 // pred_check_branch
      %177 = sbr.rel (%p175) target = $region32
    $region31: #{tpu_custom_call.1} parent=5 // pred_region
      // Predicated region
      $region33: #{tpu_custom_call.1} parent=31 // pred_check
        %p178 = pneg %p31
      $region34: #{tpu_custom_call.1} parent=31 // pred_check_branch
        %180 = sbr.rel (%p178) target = $region36
      $region35: #{tpu_custom_call.1} parent=31 // pred_region
        %p181 = scmp.lt.s32.totalorder %s11, 1
        %s182 = scalar_select %p181, %s11, 1
        %s183 = smul.addr %s182, 4
        %s184 = smul.addr %s183, 8
        %s185 = scalar_lea.vmem %s0, %s184
      $region36: #{tpu_custom_call.1} parent=31 // pred_fallthru
        _
    $region32: #{tpu_custom_call.1} parent=5 // pred_fallthru
      _
    %p186 = scmp.le.s32.totalorder 1, %s11
    %p187 = scmp.lt.s32.totalorder %s11, 3
    %p188 = pnand %p186, %p187
    %p189 = pneg %p188
    // Predicated region
    $region37: #{tpu_custom_call.1} parent=5 // pred_check
      _
    $region38: #{tpu_custom_call.1} parent=5 // pred_check_branch
      %191 = sbr.rel (%p188) target = $region40
    $region39: #{tpu_custom_call.1} parent=5 // pred_region
      %s192 = ssub.s32 %s11, 1
      %p193 = scmp.lt.s32.totalorder %s16, 1
      %s194 = scalar_select %p193, %s16, 1
      %s195 = smul.addr %s194, 4
      %s196 = smul.addr %s195, 8
      %s197 = scalar_lea.vmem %s0, %s196
      %p198 = pneg %p37
      %p199 = pneg %p34
      %p200 = pneg %p58
      %p201 = pneg %p55
      %p202 = pneg %p79
      %p203 = pneg %p76
      %p204 = pneg %p100
      %p205 = pneg %p97
      %p206 = pneg %p121
      %p207 = pneg %p118
      %p208 = pneg %p147
      %p209 = pneg %p144
      %p210 = scmp.lt.s32.totalorder %s16, 1
      %s211 = scalar_select %p210, %s16, 1
      %s212 = smul.addr %s211, 4
      %s213 = smul.addr %s212, 8
      %s214 = scalar_lea.vmem %s5, %s213
      %p215 = scmp.lt.s32.totalorder %s16, 1
      %s216 = scalar_select %p215, %s16, 1
      %s217 = smul.addr %s216, 4
      %s218 = smul.addr %s217, 8
      %s219 = scalar_lea.vmem %s0, %s218
      %p220 = scmp.lt.s32.totalorder %s16, 1
      %s221 = scalar_select %p220, %s16, 1
      %s222 = smul.addr %s221, 4
      %s223 = smul.addr %s222, 8
      %s224 = scalar_lea.vmem %s5, %s223
      %v225 = vld [vmem:[%s219] sm:$0xff]
      %v226 = vld [vmem:[%s219 + $0x8] sm:$0xff]
      %v227 = vld [vmem:[%s219 + $0x10] sm:$0xff]
      %v228 = vld [vmem:[%s219 + $0x18] sm:$0xff]
      %v229 = vperm.slane %v225, 0
      %v230 = vlaneseq
      %v231 = vshrl.u32 %v230, 7
      %233 = vset.pattern.permute.xlu0 %v231
      %234 = vperm.xlu0 %233, %v229
      %v235 = vpop.permute.xlu0 %234
      %v236 = vlaneseq
      %v237 = vshrl.u32 %v236, 7
      %v238 = vadd.s32 %v237, 8
      %239 = vset.pattern.permute.xlu0 %v238
      %240 = vperm.xlu0 %239, %v229
      %v241 = vpop.permute.xlu0 %240
      %v242 = vperm.slane %v225, 1
      %v243 = vlaneseq
      %v244 = vshrl.u32 %v243, 7
      %246 = vset.pattern.permute.xlu0 %v244
      %247 = vperm.xlu0 %246, %v242
      %v248 = vpop.permute.xlu0 %247
      %v249 = vlaneseq
      %v250 = vshrl.u32 %v249, 7
      %v251 = vadd.s32 %v250, 8
      %252 = vset.pattern.permute.xlu0 %v251
      %253 = vperm.xlu0 %252, %v242
      %v254 = vpop.permute.xlu0 %253
      %v255 = vperm.slane %v225, 2
      %v256 = vlaneseq
      %v257 = vshrl.u32 %v256, 7
      %259 = vset.pattern.permute.xlu0 %v257
      %260 = vperm.xlu0 %259, %v255
      %v261 = vpop.permute.xlu0 %260
      %v262 = vlaneseq
      %v263 = vshrl.u32 %v262, 7
      %v264 = vadd.s32 %v263, 8
      %265 = vset.pattern.permute.xlu0 %v264
      %266 = vperm.xlu0 %265, %v255
      %v267 = vpop.permute.xlu0 %266
      %v268 = vperm.slane %v225, 3
      %v269 = vlaneseq
      %v270 = vshrl.u32 %v269, 7
      %272 = vset.pattern.permute.xlu0 %v270
      %273 = vperm.xlu0 %272, %v268
      %v274 = vpop.permute.xlu0 %273
      %v275 = vlaneseq
      %v276 = vshrl.u32 %v275, 7
      %v277 = vadd.s32 %v276, 8
      %278 = vset.pattern.permute.xlu0 %v277
      %279 = vperm.xlu0 %278, %v268
      %v280 = vpop.permute.xlu0 %279
      %v281 = vperm.slane %v225, 4
      %v282 = vlaneseq
      %v283 = vshrl.u32 %v282, 7
      %285 = vset.pattern.permute.xlu0 %v283
      %286 = vperm.xlu0 %285, %v281
      %v287 = vpop.permute.xlu0 %286
      %v288 = vlaneseq
      %v289 = vshrl.u32 %v288, 7
      %v290 = vadd.s32 %v289, 8
      %291 = vset.pattern.permute.xlu0 %v290
      %292 = vperm.xlu0 %291, %v281
      %v293 = vpop.permute.xlu0 %292
      %v294 = vperm.slane %v225, 5
      %v295 = vlaneseq
      %v296 = vshrl.u32 %v295, 7
      %298 = vset.pattern.permute.xlu0 %v296
      %299 = vperm.xlu0 %298, %v294
      %v300 = vpop.permute.xlu0 %299
      %v301 = vlaneseq
      %v302 = vshrl.u32 %v301, 7
      %v303 = vadd.s32 %v302, 8
      %304 = vset.pattern.permute.xlu0 %v303
      %305 = vperm.xlu0 %304, %v294
      %v306 = vpop.permute.xlu0 %305
      %v307 = vperm.slane %v225, 6
      %v308 = vlaneseq
      %v309 = vshrl.u32 %v308, 7
      %311 = vset.pattern.permute.xlu0 %v309
      %312 = vperm.xlu0 %311, %v307
      %v313 = vpop.permute.xlu0 %312
      %v314 = vlaneseq
      %v315 = vshrl.u32 %v314, 7
      %v316 = vadd.s32 %v315, 8
      %317 = vset.pattern.permute.xlu0 %v316
      %318 = vperm.xlu0 %317, %v307
      %v319 = vpop.permute.xlu0 %318
      %v320 = vperm.slane %v225, 7
      %v321 = vlaneseq
      %v322 = vshrl.u32 %v321, 7
      %324 = vset.pattern.permute.xlu0 %v322
      %325 = vperm.xlu0 %324, %v320
      %v326 = vpop.permute.xlu0 %325
      %v327 = vlaneseq
      %v328 = vshrl.u32 %v327, 7
      %v329 = vadd.s32 %v328, 8
      %330 = vset.pattern.permute.xlu0 %v329
      %331 = vperm.xlu0 %330, %v320
      %v332 = vpop.permute.xlu0 %331
      %v333 = vperm.slane %v226, 0
      %v334 = vlaneseq
      %v335 = vshrl.u32 %v334, 7
      %337 = vset.pattern.permute.xlu0 %v335
      %338 = vperm.xlu0 %337, %v333
      %v339 = vpop.permute.xlu0 %338
      %v340 = vlaneseq
      %v341 = vshrl.u32 %v340, 7
      %v342 = vadd.s32 %v341, 8
      %343 = vset.pattern.permute.xlu0 %v342
      %344 = vperm.xlu0 %343, %v333
      %v345 = vpop.permute.xlu0 %344
      %v346 = vperm.slane %v226, 1
      %v347 = vlaneseq
      %v348 = vshrl.u32 %v347, 7
      %350 = vset.pattern.permute.xlu0 %v348
      %351 = vperm.xlu0 %350, %v346
      %v352 = vpop.permute.xlu0 %351
      %v353 = vlaneseq
      %v354 = vshrl.u32 %v353, 7
      %v355 = vadd.s32 %v354, 8
      %356 = vset.pattern.permute.xlu0 %v355
      %357 = vperm.xlu0 %356, %v346
      %v358 = vpop.permute.xlu0 %357
      %v359 = vperm.slane %v226, 2
      %v360 = vlaneseq
      %v361 = vshrl.u32 %v360, 7
      %363 = vset.pattern.permute.xlu0 %v361
      %364 = vperm.xlu0 %363, %v359
      %v365 = vpop.permute.xlu0 %364
      %v366 = vlaneseq
      %v367 = vshrl.u32 %v366, 7
      %v368 = vadd.s32 %v367, 8
      %369 = vset.pattern.permute.xlu0 %v368
      %370 = vperm.xlu0 %369, %v359
      %v371 = vpop.permute.xlu0 %370
      %v372 = vperm.slane %v226, 3
      %v373 = vlaneseq
      %v374 = vshrl.u32 %v373, 7
      %376 = vset.pattern.permute.xlu0 %v374
      %377 = vperm.xlu0 %376, %v372
      %v378 = vpop.permute.xlu0 %377
      %v379 = vlaneseq
      %v380 = vshrl.u32 %v379, 7
      %v381 = vadd.s32 %v380, 8
      %382 = vset.pattern.permute.xlu0 %v381
      %383 = vperm.xlu0 %382, %v372
      %v384 = vpop.permute.xlu0 %383
      %v385 = vperm.slane %v226, 4
      %v386 = vlaneseq
      %v387 = vshrl.u32 %v386, 7
      %389 = vset.pattern.permute.xlu0 %v387
      %390 = vperm.xlu0 %389, %v385
      %v391 = vpop.permute.xlu0 %390
      %v392 = vlaneseq
      %v393 = vshrl.u32 %v392, 7
      %v394 = vadd.s32 %v393, 8
      %395 = vset.pattern.permute.xlu0 %v394
      %396 = vperm.xlu0 %395, %v385
      %v397 = vpop.permute.xlu0 %396
      %v398 = vperm.slane %v226, 5
      %v399 = vlaneseq
      %v400 = vshrl.u32 %v399, 7
      %402 = vset.pattern.permute.xlu0 %v400
      %403 = vperm.xlu0 %402, %v398
      %v404 = vpop.permute.xlu0 %403
      %v405 = vlaneseq
      %v406 = vshrl.u32 %v405, 7
      %v407 = vadd.s32 %v406, 8
      %408 = vset.pattern.permute.xlu0 %v407
      %409 = vperm.xlu0 %408, %v398
      %v410 = vpop.permute.xlu0 %409
      %v411 = vperm.slane %v226, 6
      %v412 = vlaneseq
      %v413 = vshrl.u32 %v412, 7
      %415 = vset.pattern.permute.xlu0 %v413
      %416 = vperm.xlu0 %415, %v411
      %v417 = vpop.permute.xlu0 %416
      %v418 = vlaneseq
      %v419 = vshrl.u32 %v418, 7
      %v420 = vadd.s32 %v419, 8
      %421 = vset.pattern.permute.xlu0 %v420
      %422 = vperm.xlu0 %421, %v411
      %v423 = vpop.permute.xlu0 %422
      %v424 = vperm.slane %v226, 7
      %v425 = vlaneseq
      %v426 = vshrl.u32 %v425, 7
      %428 = vset.pattern.permute.xlu0 %v426
      %429 = vperm.xlu0 %428, %v424
      %v430 = vpop.permute.xlu0 %429
      %v431 = vlaneseq
      %v432 = vshrl.u32 %v431, 7
      %v433 = vadd.s32 %v432, 8
      %434 = vset.pattern.permute.xlu0 %v433
      %435 = vperm.xlu0 %434, %v424
      %v436 = vpop.permute.xlu0 %435
      %v437 = vperm.slane %v227, 0
      %v438 = vlaneseq
      %v439 = vshrl.u32 %v438, 7
      %441 = vset.pattern.permute.xlu0 %v439
      %442 = vperm.xlu0 %441, %v437
      %v443 = vpop.permute.xlu0 %442
      %v444 = vlaneseq
      %v445 = vshrl.u32 %v444, 7
      %v446 = vadd.s32 %v445, 8
      %447 = vset.pattern.permute.xlu0 %v446
      %448 = vperm.xlu0 %447, %v437
      %v449 = vpop.permute.xlu0 %448
      %v450 = vperm.slane %v227, 1
      %v451 = vlaneseq
      %v452 = vshrl.u32 %v451, 7
      %454 = vset.pattern.permute.xlu0 %v452
      %455 = vperm.xlu0 %454, %v450
      %v456 = vpop.permute.xlu0 %455
      %v457 = vlaneseq
      %v458 = vshrl.u32 %v457, 7
      %v459 = vadd.s32 %v458, 8
      %460 = vset.pattern.permute.xlu0 %v459
      %461 = vperm.xlu0 %460, %v450
      %v462 = vpop.permute.xlu0 %461
      %v463 = vperm.slane %v227, 2
      %v464 = vlaneseq
      %v465 = vshrl.u32 %v464, 7
      %467 = vset.pattern.permute.xlu0 %v465
      %468 = vperm.xlu0 %467, %v463
      %v469 = vpop.permute.xlu0 %468
      %v470 = vlaneseq
      %v471 = vshrl.u32 %v470, 7
      %v472 = vadd.s32 %v471, 8
      %473 = vset.pattern.permute.xlu0 %v472
      %474 = vperm.xlu0 %473, %v463
      %v475 = vpop.permute.xlu0 %474
      %v476 = vperm.slane %v227, 3
      %v477 = vlaneseq
      %v478 = vshrl.u32 %v477, 7
      %480 = vset.pattern.permute.xlu0 %v478
      %481 = vperm.xlu0 %480, %v476
      %v482 = vpop.permute.xlu0 %481
      %v483 = vlaneseq
      %v484 = vshrl.u32 %v483, 7
      %v485 = vadd.s32 %v484, 8
      %486 = vset.pattern.permute.xlu0 %v485
      %487 = vperm.xlu0 %486, %v476
      %v488 = vpop.permute.xlu0 %487
      %v489 = vperm.slane %v227, 4
      %v490 = vlaneseq
      %v491 = vshrl.u32 %v490, 7
      %493 = vset.pattern.permute.xlu0 %v491
      %494 = vperm.xlu0 %493, %v489
      %v495 = vpop.permute.xlu0 %494
      %v496 = vlaneseq
      %v497 = vshrl.u32 %v496, 7
      %v498 = vadd.s32 %v497, 8
      %499 = vset.pattern.permute.xlu0 %v498
      %500 = vperm.xlu0 %499, %v489
      %v501 = vpop.permute.xlu0 %500
      %v502 = vperm.slane %v227, 5
      %v503 = vlaneseq
      %v504 = vshrl.u32 %v503, 7
      %506 = vset.pattern.permute.xlu0 %v504
      %507 = vperm.xlu0 %506, %v502
      %v508 = vpop.permute.xlu0 %507
      %v509 = vlaneseq
      %v510 = vshrl.u32 %v509, 7
      %v511 = vadd.s32 %v510, 8
      %512 = vset.pattern.permute.xlu0 %v511
      %513 = vperm.xlu0 %512, %v502
      %v514 = vpop.permute.xlu0 %513
      %v515 = vperm.slane %v227, 6
      %v516 = vlaneseq
      %v517 = vshrl.u32 %v516, 7
      %519 = vset.pattern.permute.xlu0 %v517
      %520 = vperm.xlu0 %519, %v515
      %v521 = vpop.permute.xlu0 %520
      %v522 = vlaneseq
      %v523 = vshrl.u32 %v522, 7
      %v524 = vadd.s32 %v523, 8
      %525 = vset.pattern.permute.xlu0 %v524
      %526 = vperm.xlu0 %525, %v515
      %v527 = vpop.permute.xlu0 %526
      %v528 = vperm.slane %v227, 7
      %v529 = vlaneseq
      %v530 = vshrl.u32 %v529, 7
      %532 = vset.pattern.permute.xlu0 %v530
      %533 = vperm.xlu0 %532, %v528
      %v534 = vpop.permute.xlu0 %533
      %v535 = vlaneseq
      %v536 = vshrl.u32 %v535, 7
      %v537 = vadd.s32 %v536, 8
      %538 = vset.pattern.permute.xlu0 %v537
      %539 = vperm.xlu0 %538, %v528
      %v540 = vpop.permute.xlu0 %539
      %v541 = vperm.slane %v228, 0
      %v542 = vlaneseq
      %v543 = vshrl.u32 %v542, 7
      %545 = vset.pattern.permute.xlu0 %v543
      %546 = vperm.xlu0 %545, %v541
      %v547 = vpop.permute.xlu0 %546
      %v548 = vlaneseq
      %v549 = vshrl.u32 %v548, 7
      %v550 = vadd.s32 %v549, 8
      %551 = vset.pattern.permute.xlu0 %v550
      %552 = vperm.xlu0 %551, %v541
      %v553 = vpop.permute.xlu0 %552
      %v554 = vperm.slane %v228, 1
      %v555 = vlaneseq
      %v556 = vshrl.u32 %v555, 7
      %558 = vset.pattern.permute.xlu0 %v556
      %559 = vperm.xlu0 %558, %v554
      %v560 = vpop.permute.xlu0 %559
      %v561 = vlaneseq
      %v562 = vshrl.u32 %v561, 7
      %v563 = vadd.s32 %v562, 8
      %564 = vset.pattern.permute.xlu0 %v563
      %565 = vperm.xlu0 %564, %v554
      %v566 = vpop.permute.xlu0 %565
      %v567 = vperm.slane %v228, 2
      %v568 = vlaneseq
      %v569 = vshrl.u32 %v568, 7
      %571 = vset.pattern.permute.xlu0 %v569
      %572 = vperm.xlu0 %571, %v567
      %v573 = vpop.permute.xlu0 %572
      %v574 = vlaneseq
      %v575 = vshrl.u32 %v574, 7
      %v576 = vadd.s32 %v575, 8
      %577 = vset.pattern.permute.xlu0 %v576
      %578 = vperm.xlu0 %577, %v567
      %v579 = vpop.permute.xlu0 %578
      %v580 = vperm.slane %v228, 3
      %v581 = vlaneseq
      %v582 = vshrl.u32 %v581, 7
      %584 = vset.pattern.permute.xlu0 %v582
      %585 = vperm.xlu0 %584, %v580
      %v586 = vpop.permute.xlu0 %585
      %v587 = vlaneseq
      %v588 = vshrl.u32 %v587, 7
      %v589 = vadd.s32 %v588, 8
      %590 = vset.pattern.permute.xlu0 %v589
      %591 = vperm.xlu0 %590, %v580
      %v592 = vpop.permute.xlu0 %591
      %v593 = vperm.slane %v228, 4
      %v594 = vlaneseq
      %v595 = vshrl.u32 %v594, 7
      %597 = vset.pattern.permute.xlu0 %v595
      %598 = vperm.xlu0 %597, %v593
      %v599 = vpop.permute.xlu0 %598
      %v600 = vlaneseq
      %v601 = vshrl.u32 %v600, 7
      %v602 = vadd.s32 %v601, 8
      %603 = vset.pattern.permute.xlu0 %v602
      %604 = vperm.xlu0 %603, %v593
      %v605 = vpop.permute.xlu0 %604
      %v606 = vperm.slane %v228, 5
      %v607 = vlaneseq
      %v608 = vshrl.u32 %v607, 7
      %610 = vset.pattern.permute.xlu0 %v608
      %611 = vperm.xlu0 %610, %v606
      %v612 = vpop.permute.xlu0 %611
      %v613 = vlaneseq
      %v614 = vshrl.u32 %v613, 7
      %v615 = vadd.s32 %v614, 8
      %616 = vset.pattern.permute.xlu0 %v615
      %617 = vperm.xlu0 %616, %v606
      %v618 = vpop.permute.xlu0 %617
      %v619 = vperm.slane %v228, 6
      %v620 = vlaneseq
      %v621 = vshrl.u32 %v620, 7
      %623 = vset.pattern.permute.xlu0 %v621
      %624 = vperm.xlu0 %623, %v619
      %v625 = vpop.permute.xlu0 %624
      %v626 = vlaneseq
      %v627 = vshrl.u32 %v626, 7
      %v628 = vadd.s32 %v627, 8
      %629 = vset.pattern.permute.xlu0 %v628
      %630 = vperm.xlu0 %629, %v619
      %v631 = vpop.permute.xlu0 %630
      %v632 = vperm.slane %v228, 7
      %v633 = vlaneseq
      %v634 = vshrl.u32 %v633, 7
      %636 = vset.pattern.permute.xlu0 %v634
      %637 = vperm.xlu0 %636, %v632
      %v638 = vpop.permute.xlu0 %637
      %v639 = vlaneseq
      %v640 = vshrl.u32 %v639, 7
      %v641 = vadd.s32 %v640, 8
      %642 = vset.pattern.permute.xlu0 %v641
      %643 = vperm.xlu0 %642, %v632
      %v644 = vpop.permute.xlu0 %643
      %v645 = vld [vmem:[%s1] sm:$0xff]
      %v646 = vld [vmem:[%s1 + $0x8] sm:$0xff]
      %v647 = vld [vmem:[%s1 + $0x10] sm:$0xff]
      %v648 = vld [vmem:[%s1 + $0x18] sm:$0xff]
      %v649 = vld [vmem:[%s1 + $0x20] sm:$0xff]
      %v650 = vld [vmem:[%s1 + $0x28] sm:$0xff]
      %v651 = vld [vmem:[%s1 + $0x30] sm:$0xff]
      %v652 = vld [vmem:[%s1 + $0x38] sm:$0xff]
      %v653 = vld [vmem:[%s1 + $0x40] sm:$0xff]
      %v654 = vld [vmem:[%s1 + $0x48] sm:$0xff]
      %v655 = vld [vmem:[%s1 + $0x50] sm:$0xff]
      %v656 = vld [vmem:[%s1 + $0x58] sm:$0xff]
      %v657 = vld [vmem:[%s1 + $0x60] sm:$0xff]
      %v658 = vld [vmem:[%s1 + $0x68] sm:$0xff]
      %v659 = vld [vmem:[%s1 + $0x70] sm:$0xff]
      %v660 = vld [vmem:[%s1 + $0x78] sm:$0xff]
      %v661 = vld [vmem:[%s1 + $0x80] sm:$0xff]
      %v662 = vld [vmem:[%s1 + $0x88] sm:$0xff]
      %v663 = vld [vmem:[%s1 + $0x90] sm:$0xff]
      %v664 = vld [vmem:[%s1 + $0x98] sm:$0xff]
      %v665 = vld [vmem:[%s1 + $0xa0] sm:$0xff]
      %v666 = vld [vmem:[%s1 + $0xa8] sm:$0xff]
      %v667 = vld [vmem:[%s1 + $0xb0] sm:$0xff]
      %v668 = vld [vmem:[%s1 + $0xb8] sm:$0xff]
      %v669 = vld [vmem:[%s1 + $0xc0] sm:$0xff]
      %v670 = vld [vmem:[%s1 + $0xc8] sm:$0xff]
      %v671 = vld [vmem:[%s1 + $0xd0] sm:$0xff]
      %v672 = vld [vmem:[%s1 + $0xd8] sm:$0xff]
      %v673 = vld [vmem:[%s1 + $0xe0] sm:$0xff]
      %v674 = vld [vmem:[%s1 + $0xe8] sm:$0xff]
      %v675 = vld [vmem:[%s1 + $0xf0] sm:$0xff]
      %v676 = vld [vmem:[%s1 + $0xf8] sm:$0xff]
      %v677 = vld [vmem:[%s1 + $0x100] sm:$0xff]
      %v678 = vld [vmem:[%s1 + $0x108] sm:$0xff]
      %v679 = vld [vmem:[%s1 + $0x110] sm:$0xff]
      %v680 = vld [vmem:[%s1 + $0x118] sm:$0xff]
      %v681 = vld [vmem:[%s1 + $0x120] sm:$0xff]
      %v682 = vld [vmem:[%s1 + $0x128] sm:$0xff]
      %v683 = vld [vmem:[%s1 + $0x130] sm:$0xff]
      %v684 = vld [vmem:[%s1 + $0x138] sm:$0xff]
      %v685 = vld [vmem:[%s1 + $0x140] sm:$0xff]
      %v686 = vld [vmem:[%s1 + $0x148] sm:$0xff]
      %v687 = vld [vmem:[%s1 + $0x150] sm:$0xff]
      %v688 = vld [vmem:[%s1 + $0x158] sm:$0xff]
      %v689 = vld [vmem:[%s1 + $0x160] sm:$0xff]
      %v690 = vld [vmem:[%s1 + $0x168] sm:$0xff]
      %v691 = vld [vmem:[%s1 + $0x170] sm:$0xff]
      %v692 = vld [vmem:[%s1 + $0x178] sm:$0xff]
      %v693 = vld [vmem:[%s1 + $0x180] sm:$0xff]
      %v694 = vld [vmem:[%s1 + $0x188] sm:$0xff]
      %v695 = vld [vmem:[%s1 + $0x190] sm:$0xff]
      %v696 = vld [vmem:[%s1 + $0x198] sm:$0xff]
      %v697 = vld [vmem:[%s1 + $0x1a0] sm:$0xff]
      %v698 = vld [vmem:[%s1 + $0x1a8] sm:$0xff]
      %v699 = vld [vmem:[%s1 + $0x1b0] sm:$0xff]
      %v700 = vld [vmem:[%s1 + $0x1b8] sm:$0xff]
      %v701 = vld [vmem:[%s1 + $0x1c0] sm:$0xff]
      %v702 = vld [vmem:[%s1 + $0x1c8] sm:$0xff]
      %v703 = vld [vmem:[%s1 + $0x1d0] sm:$0xff]
      %v704 = vld [vmem:[%s1 + $0x1d8] sm:$0xff]
      %v705 = vld [vmem:[%s1 + $0x1e0] sm:$0xff]
      %v706 = vld [vmem:[%s1 + $0x1e8] sm:$0xff]
      %v707 = vld [vmem:[%s1 + $0x1f0] sm:$0xff]
      %v708 = vld [vmem:[%s1 + $0x1f8] sm:$0xff]
      %v709 = vmul.f32 %v235, %v645
      %v710 = vmul.f32 %v241, %v646
      %v711 = vmul.f32 %v248, %v647
      %v712 = vmul.f32 %v254, %v648
      %v713 = vmul.f32 %v261, %v649
      %v714 = vmul.f32 %v267, %v650
      %v715 = vmul.f32 %v274, %v651
      %v716 = vmul.f32 %v280, %v652
      %v717 = vmul.f32 %v287, %v653
      %v718 = vmul.f32 %v293, %v654
      %v719 = vmul.f32 %v300, %v655
      %v720 = vmul.f32 %v306, %v656
      %v721 = vmul.f32 %v313, %v657
      %v722 = vmul.f32 %v319, %v658
      %v723 = vmul.f32 %v326, %v659
      %v724 = vmul.f32 %v332, %v660
      %v725 = vmul.f32 %v339, %v661
      %v726 = vmul.f32 %v345, %v662
      %v727 = vmul.f32 %v352, %v663
      %v728 = vmul.f32 %v358, %v664
      %v729 = vmul.f32 %v365, %v665
      %v730 = vmul.f32 %v371, %v666
      %v731 = vmul.f32 %v378, %v667
      %v732 = vmul.f32 %v384, %v668
      %v733 = vmul.f32 %v391, %v669
      %v734 = vmul.f32 %v397, %v670
      %v735 = vmul.f32 %v404, %v671
      %v736 = vmul.f32 %v410, %v672
      %v737 = vmul.f32 %v417, %v673
      %v738 = vmul.f32 %v423, %v674
      %v739 = vmul.f32 %v430, %v675
      %v740 = vmul.f32 %v436, %v676
      %v741 = vmul.f32 %v443, %v677
      %v742 = vmul.f32 %v449, %v678
      %v743 = vmul.f32 %v456, %v679
      %v744 = vmul.f32 %v462, %v680
      %v745 = vmul.f32 %v469, %v681
      %v746 = vmul.f32 %v475, %v682
      %v747 = vmul.f32 %v482, %v683
      %v748 = vmul.f32 %v488, %v684
      %v749 = vmul.f32 %v495, %v685
      %v750 = vmul.f32 %v501, %v686
      %v751 = vmul.f32 %v508, %v687
      %v752 = vmul.f32 %v514, %v688
      %v753 = vmul.f32 %v521, %v689
      %v754 = vmul.f32 %v527, %v690
      %v755 = vmul.f32 %v534, %v691
      %v756 = vmul.f32 %v540, %v692
      %v757 = vmul.f32 %v547, %v693
      %v758 = vmul.f32 %v553, %v694
      %v759 = vmul.f32 %v560, %v695
      %v760 = vmul.f32 %v566, %v696
      %v761 = vmul.f32 %v573, %v697
      %v762 = vmul.f32 %v579, %v698
      %v763 = vmul.f32 %v586, %v699
      %v764 = vmul.f32 %v592, %v700
      %v765 = vmul.f32 %v599, %v701
      %v766 = vmul.f32 %v605, %v702
      %v767 = vmul.f32 %v612, %v703
      %v768 = vmul.f32 %v618, %v704
      %v769 = vmul.f32 %v625, %v705
      %v770 = vmul.f32 %v631, %v706
      %v771 = vmul.f32 %v638, %v707
      %v772 = vmul.f32 %v644, %v708
      %vm773 = vcmask 130048
      %v774 = vsel %vm773, %v709, 0.0
      %v775 = vsel %vm773, %v710, 0.0
      %v776 = vadd.f32 %v774, %v775
      %v777 = vrot.slane %v776, 4
      %v778 = vadd.f32 %v776, %v777
      %v779 = vrot.slane %v778, 2
      %v780 = vadd.f32 %v778, %v779
      %v781 = vrot.slane %v780, 1
      %v782 = vadd.f32 %v780, %v781
      %v783 = vsel %vm773, %v711, 0.0
      %v784 = vsel %vm773, %v712, 0.0
      %v785 = vadd.f32 %v783, %v784
      %v786 = vrot.slane %v785, 4
      %v787 = vadd.f32 %v785, %v786
      %v788 = vrot.slane %v787, 2
      %v789 = vadd.f32 %v787, %v788
      %v790 = vrot.slane %v789, 1
      %v791 = vadd.f32 %v789, %v790
      %v792 = vsel %vm773, %v713, 0.0
      %v793 = vsel %vm773, %v714, 0.0
      %v794 = vadd.f32 %v792, %v793
      %v795 = vrot.slane %v794, 4
      %v796 = vadd.f32 %v794, %v795
      %v797 = vrot.slane %v796, 2
      %v798 = vadd.f32 %v796, %v797
      %v799 = vrot.slane %v798, 1
      %v800 = vadd.f32 %v798, %v799
      %v801 = vsel %vm773, %v715, 0.0
      %v802 = vsel %vm773, %v716, 0.0
      %v803 = vadd.f32 %v801, %v802
      %v804 = vrot.slane %v803, 4
      %v805 = vadd.f32 %v803, %v804
      %v806 = vrot.slane %v805, 2
      %v807 = vadd.f32 %v805, %v806
      %v808 = vrot.slane %v807, 1
      %v809 = vadd.f32 %v807, %v808
      %v810 = vsel %vm773, %v717, 0.0
      %v811 = vsel %vm773, %v718, 0.0
      %v812 = vadd.f32 %v810, %v811
      %v813 = vrot.slane %v812, 4
      %v814 = vadd.f32 %v812, %v813
      %v815 = vrot.slane %v814, 2
      %v816 = vadd.f32 %v814, %v815
      %v817 = vrot.slane %v816, 1
      %v818 = vadd.f32 %v816, %v817
      %v819 = vsel %vm773, %v719, 0.0
      %v820 = vsel %vm773, %v720, 0.0
      %v821 = vadd.f32 %v819, %v820
      %v822 = vrot.slane %v821, 4
      %v823 = vadd.f32 %v821, %v822
      %v824 = vrot.slane %v823, 2
      %v825 = vadd.f32 %v823, %v824
      %v826 = vrot.slane %v825, 1
      %v827 = vadd.f32 %v825, %v826
      %v828 = vsel %vm773, %v721, 0.0
      %v829 = vsel %vm773, %v722, 0.0
      %v830 = vadd.f32 %v828, %v829
      %v831 = vrot.slane %v830, 4
      %v832 = vadd.f32 %v830, %v831
      %v833 = vrot.slane %v832, 2
      %v834 = vadd.f32 %v832, %v833
      %v835 = vrot.slane %v834, 1
      %v836 = vadd.f32 %v834, %v835
      %v837 = vsel %vm773, %v723, 0.0
      %v838 = vsel %vm773, %v724, 0.0
      %v839 = vadd.f32 %v837, %v838
      %v840 = vrot.slane %v839, 4
      %v841 = vadd.f32 %v839, %v840
      %v842 = vrot.slane %v841, 2
      %v843 = vadd.f32 %v841, %v842
      %v844 = vrot.slane %v843, 1
      %v845 = vadd.f32 %v843, %v844
      %v846 = vsel %vm773, %v725, 0.0
      %v847 = vsel %vm773, %v726, 0.0
      %v848 = vadd.f32 %v846, %v847
      %v849 = vrot.slane %v848, 4
      %v850 = vadd.f32 %v848, %v849
      %v851 = vrot.slane %v850, 2
      %v852 = vadd.f32 %v850, %v851
      %v853 = vrot.slane %v852, 1
      %v854 = vadd.f32 %v852, %v853
      %v855 = vsel %vm773, %v727, 0.0
      %v856 = vsel %vm773, %v728, 0.0
      %v857 = vadd.f32 %v855, %v856
      %v858 = vrot.slane %v857, 4
      %v859 = vadd.f32 %v857, %v858
      %v860 = vrot.slane %v859, 2
      %v861 = vadd.f32 %v859, %v860
      %v862 = vrot.slane %v861, 1
      %v863 = vadd.f32 %v861, %v862
      %v864 = vsel %vm773, %v729, 0.0
      %v865 = vsel %vm773, %v730, 0.0
      %v866 = vadd.f32 %v864, %v865
      %v867 = vrot.slane %v866, 4
      %v868 = vadd.f32 %v866, %v867
      %v869 = vrot.slane %v868, 2
      %v870 = vadd.f32 %v868, %v869
      %v871 = vrot.slane %v870, 1
      %v872 = vadd.f32 %v870, %v871
      %v873 = vsel %vm773, %v731, 0.0
      %v874 = vsel %vm773, %v732, 0.0
      %v875 = vadd.f32 %v873, %v874
      %v876 = vrot.slane %v875, 4
      %v877 = vadd.f32 %v875, %v876
      %v878 = vrot.slane %v877, 2
      %v879 = vadd.f32 %v877, %v878
      %v880 = vrot.slane %v879, 1
      %v881 = vadd.f32 %v879, %v880
      %v882 = vsel %vm773, %v733, 0.0
      %v883 = vsel %vm773, %v734, 0.0
      %v884 = vadd.f32 %v882, %v883
      %v885 = vrot.slane %v884, 4
      %v886 = vadd.f32 %v884, %v885
      %v887 = vrot.slane %v886, 2
      %v888 = vadd.f32 %v886, %v887
      %v889 = vrot.slane %v888, 1
      %v890 = vadd.f32 %v888, %v889
      %v891 = vsel %vm773, %v735, 0.0
      %v892 = vsel %vm773, %v736, 0.0
      %v893 = vadd.f32 %v891, %v892
      %v894 = vrot.slane %v893, 4
      %v895 = vadd.f32 %v893, %v894
      %v896 = vrot.slane %v895, 2
      %v897 = vadd.f32 %v895, %v896
      %v898 = vrot.slane %v897, 1
      %v899 = vadd.f32 %v897, %v898
      %v900 = vsel %vm773, %v737, 0.0
      %v901 = vsel %vm773, %v738, 0.0
      %v902 = vadd.f32 %v900, %v901
      %v903 = vrot.slane %v902, 4
      %v904 = vadd.f32 %v902, %v903
      %v905 = vrot.slane %v904, 2
      %v906 = vadd.f32 %v904, %v905
      %v907 = vrot.slane %v906, 1
      %v908 = vadd.f32 %v906, %v907
      %v909 = vsel %vm773, %v739, 0.0
      %v910 = vsel %vm773, %v740, 0.0
      %v911 = vadd.f32 %v909, %v910
      %v912 = vrot.slane %v911, 4
      %v913 = vadd.f32 %v911, %v912
      %v914 = vrot.slane %v913, 2
      %v915 = vadd.f32 %v913, %v914
      %v916 = vrot.slane %v915, 1
      %v917 = vadd.f32 %v915, %v916
      %v918 = vsel %vm773, %v741, 0.0
      %v919 = vsel %vm773, %v742, 0.0
      %v920 = vadd.f32 %v918, %v919
      %v921 = vrot.slane %v920, 4
      %v922 = vadd.f32 %v920, %v921
      %v923 = vrot.slane %v922, 2
      %v924 = vadd.f32 %v922, %v923
      %v925 = vrot.slane %v924, 1
      %v926 = vadd.f32 %v924, %v925
      %v927 = vsel %vm773, %v743, 0.0
      %v928 = vsel %vm773, %v744, 0.0
      %v929 = vadd.f32 %v927, %v928
      %v930 = vrot.slane %v929, 4
      %v931 = vadd.f32 %v929, %v930
      %v932 = vrot.slane %v931, 2
      %v933 = vadd.f32 %v931, %v932
      %v934 = vrot.slane %v933, 1
      %v935 = vadd.f32 %v933, %v934
      %v936 = vsel %vm773, %v745, 0.0
      %v937 = vsel %vm773, %v746, 0.0
      %v938 = vadd.f32 %v936, %v937
      %v939 = vrot.slane %v938, 4
      %v940 = vadd.f32 %v938, %v939
      %v941 = vrot.slane %v940, 2
      %v942 = vadd.f32 %v940, %v941
      %v943 = vrot.slane %v942, 1
      %v944 = vadd.f32 %v942, %v943
      %v945 = vsel %vm773, %v747, 0.0
      %v946 = vsel %vm773, %v748, 0.0
      %v947 = vadd.f32 %v945, %v946
      %v948 = vrot.slane %v947, 4
      %v949 = vadd.f32 %v947, %v948
      %v950 = vrot.slane %v949, 2
      %v951 = vadd.f32 %v949, %v950
      %v952 = vrot.slane %v951, 1
      %v953 = vadd.f32 %v951, %v952
      %v954 = vsel %vm773, %v749, 0.0
      %v955 = vsel %vm773, %v750, 0.0
      %v956 = vadd.f32 %v954, %v955
      %v957 = vrot.slane %v956, 4
      %v958 = vadd.f32 %v956, %v957
      %v959 = vrot.slane %v958, 2
      %v960 = vadd.f32 %v958, %v959
      %v961 = vrot.slane %v960, 1
      %v962 = vadd.f32 %v960, %v961
      %v963 = vsel %vm773, %v751, 0.0
      %v964 = vsel %vm773, %v752, 0.0
      %v965 = vadd.f32 %v963, %v964
      %v966 = vrot.slane %v965, 4
      %v967 = vadd.f32 %v965, %v966
      %v968 = vrot.slane %v967, 2
      %v969 = vadd.f32 %v967, %v968
      %v970 = vrot.slane %v969, 1
      %v971 = vadd.f32 %v969, %v970
      %v972 = vsel %vm773, %v753, 0.0
      %v973 = vsel %vm773, %v754, 0.0
      %v974 = vadd.f32 %v972, %v973
      %v975 = vrot.slane %v974, 4
      %v976 = vadd.f32 %v974, %v975
      %v977 = vrot.slane %v976, 2
      %v978 = vadd.f32 %v976, %v977
      %v979 = vrot.slane %v978, 1
      %v980 = vadd.f32 %v978, %v979
      %v981 = vsel %vm773, %v755, 0.0
      %v982 = vsel %vm773, %v756, 0.0
      %v983 = vadd.f32 %v981, %v982
      %v984 = vrot.slane %v983, 4
      %v985 = vadd.f32 %v983, %v984
      %v986 = vrot.slane %v985, 2
      %v987 = vadd.f32 %v985, %v986
      %v988 = vrot.slane %v987, 1
      %v989 = vadd.f32 %v987, %v988
      %v990 = vsel %vm773, %v757, 0.0
      %v991 = vsel %vm773, %v758, 0.0
      %v992 = vadd.f32 %v990, %v991
      %v993 = vrot.slane %v992, 4
      %v994 = vadd.f32 %v992, %v993
      %v995 = vrot.slane %v994, 2
      %v996 = vadd.f32 %v994, %v995
      %v997 = vrot.slane %v996, 1
      %v998 = vadd.f32 %v996, %v997
      %v999 = vsel %vm773, %v759, 0.0
      %v1000 = vsel %vm773, %v760, 0.0
      %v1001 = vadd.f32 %v999, %v1000
      %v1002 = vrot.slane %v1001, 4
      %v1003 = vadd.f32 %v1001, %v1002
      %v1004 = vrot.slane %v1003, 2
      %v1005 = vadd.f32 %v1003, %v1004
      %v1006 = vrot.slane %v1005, 1
      %v1007 = vadd.f32 %v1005, %v1006
      %v1008 = vsel %vm773, %v761, 0.0
      %v1009 = vsel %vm773, %v762, 0.0
      %v1010 = vadd.f32 %v1008, %v1009
      %v1011 = vrot.slane %v1010, 4
      %v1012 = vadd.f32 %v1010, %v1011
      %v1013 = vrot.slane %v1012, 2
      %v1014 = vadd.f32 %v1012, %v1013
      %v1015 = vrot.slane %v1014, 1
      %v1016 = vadd.f32 %v1014, %v1015
      %v1017 = vsel %vm773, %v763, 0.0
      %v1018 = vsel %vm773, %v764, 0.0
      %v1019 = vadd.f32 %v1017, %v1018
      %v1020 = vrot.slane %v1019, 4
      %v1021 = vadd.f32 %v1019, %v1020
      %v1022 = vrot.slane %v1021, 2
      %v1023 = vadd.f32 %v1021, %v1022
      %v1024 = vrot.slane %v1023, 1
      %v1025 = vadd.f32 %v1023, %v1024
      %v1026 = vsel %vm773, %v765, 0.0
      %v1027 = vsel %vm773, %v766, 0.0
      %v1028 = vadd.f32 %v1026, %v1027
      %v1029 = vrot.slane %v1028, 4
      %v1030 = vadd.f32 %v1028, %v1029
      %v1031 = vrot.slane %v1030, 2
      %v1032 = vadd.f32 %v1030, %v1031
      %v1033 = vrot.slane %v1032, 1
      %v1034 = vadd.f32 %v1032, %v1033
      %v1035 = vsel %vm773, %v767, 0.0
      %v1036 = vsel %vm773, %v768, 0.0
      %v1037 = vadd.f32 %v1035, %v1036
      %v1038 = vrot.slane %v1037, 4
      %v1039 = vadd.f32 %v1037, %v1038
      %v1040 = vrot.slane %v1039, 2
      %v1041 = vadd.f32 %v1039, %v1040
      %v1042 = vrot.slane %v1041, 1
      %v1043 = vadd.f32 %v1041, %v1042
      %v1044 = vsel %vm773, %v769, 0.0
      %v1045 = vsel %vm773, %v770, 0.0
      %v1046 = vadd.f32 %v1044, %v1045
      %v1047 = vrot.slane %v1046, 4
      %v1048 = vadd.f32 %v1046, %v1047
      %v1049 = vrot.slane %v1048, 2
      %v1050 = vadd.f32 %v1048, %v1049
      %v1051 = vrot.slane %v1050, 1
      %v1052 = vadd.f32 %v1050, %v1051
      %v1053 = vsel %vm773, %v771, 0.0
      %v1054 = vsel %vm773, %v772, 0.0
      %v1055 = vadd.f32 %v1053, %v1054
      %v1056 = vrot.slane %v1055, 4
      %v1057 = vadd.f32 %v1055, %v1056
      %v1058 = vrot.slane %v1057, 2
      %v1059 = vadd.f32 %v1057, %v1058
      %v1060 = vrot.slane %v1059, 1
      %v1061 = vadd.f32 %v1059, %v1060
      %v1062 = vld [vmem:[%s2] sm:$0xff]
      %v1063 = vld [vmem:[%s2 + $0x8] sm:$0xff]
      %v1064 = vld [vmem:[%s2 + $0x10] sm:$0xff]
      %v1065 = vld [vmem:[%s2 + $0x18] sm:$0xff]
      %1067 = vset.pattern.permute.xlu0 0
      %1068 = vperm.xlu0 %1067, %v1062
      %v1069 = vpop.permute.xlu0 %1068
      %1072 = vset.pattern.permute.xlu0 0
      %1073 = vperm.xlu0 %1072, %v1063
      %v1074 = vpop.permute.xlu0 %1073
      %1077 = vset.pattern.permute.xlu0 0
      %1078 = vperm.xlu0 %1077, %v1064
      %v1079 = vpop.permute.xlu0 %1078
      %1082 = vset.pattern.permute.xlu0 0
      %1083 = vperm.xlu0 %1082, %v1065
      %v1084 = vpop.permute.xlu0 %1083
      %v1086 = vmul.f32 %v225, %v1069
      %v1087 = vmul.f32 %v226, %v1074
      %v1088 = vmul.f32 %v227, %v1079
      %v1089 = vmul.f32 %v228, %v1084
      %v1094 = vrot.slane %v1086, 1
      %v1095 = vrot.slane %v1086, 2
      %v1096 = vrot.slane %v1086, 3
      %v1097 = vrot.slane %v1086, 4
      %v1098 = vrot.slane %v1086, 5
      %v1099 = vrot.slane %v1086, 6
      %v1100 = vrot.slane %v1086, 7
      %v1101 = vrot.slane %v1087, 1
      %v1102 = vrot.slane %v1087, 2
      %v1103 = vrot.slane %v1087, 3
      %v1104 = vrot.slane %v1087, 4
      %v1105 = vrot.slane %v1087, 5
      %v1106 = vrot.slane %v1087, 6
      %v1107 = vrot.slane %v1087, 7
      %v1108 = vrot.slane %v1088, 1
      %v1109 = vrot.slane %v1088, 2
      %v1110 = vrot.slane %v1088, 3
      %v1111 = vrot.slane %v1088, 4
      %v1112 = vrot.slane %v1088, 5
      %v1113 = vrot.slane %v1088, 6
      %v1114 = vrot.slane %v1088, 7
      %v1115 = vrot.slane %v1089, 1
      %v1116 = vrot.slane %v1089, 2
      %v1117 = vrot.slane %v1089, 3
      %v1118 = vrot.slane %v1089, 4
      %v1119 = vrot.slane %v1089, 5
      %v1120 = vrot.slane %v1089, 6
      %v1121 = vrot.slane %v1089, 7
      %v1154 = vadd.f32 %v782, %v1086
      %v1155 = vadd.f32 %v791, %v1094
      %v1156 = vadd.f32 %v800, %v1095
      %v1157 = vadd.f32 %v809, %v1096
      %v1158 = vadd.f32 %v818, %v1097
      %v1159 = vadd.f32 %v827, %v1098
      %v1160 = vadd.f32 %v836, %v1099
      %v1161 = vadd.f32 %v845, %v1100
      %v1162 = vadd.f32 %v854, %v1087
      %v1163 = vadd.f32 %v863, %v1101
      %v1164 = vadd.f32 %v872, %v1102
      %v1165 = vadd.f32 %v881, %v1103
      %v1166 = vadd.f32 %v890, %v1104
      %v1167 = vadd.f32 %v899, %v1105
      %v1168 = vadd.f32 %v908, %v1106
      %v1169 = vadd.f32 %v917, %v1107
      %v1170 = vadd.f32 %v926, %v1088
      %v1171 = vadd.f32 %v935, %v1108
      %v1172 = vadd.f32 %v944, %v1109
      %v1173 = vadd.f32 %v953, %v1110
      %v1174 = vadd.f32 %v962, %v1111
      %v1175 = vadd.f32 %v971, %v1112
      %v1176 = vadd.f32 %v980, %v1113
      %v1177 = vadd.f32 %v989, %v1114
      %v1178 = vadd.f32 %v998, %v1089
      %v1179 = vadd.f32 %v1007, %v1115
      %v1180 = vadd.f32 %v1016, %v1116
      %v1181 = vadd.f32 %v1025, %v1117
      %v1182 = vadd.f32 %v1034, %v1118
      %v1183 = vadd.f32 %v1043, %v1119
      %v1184 = vadd.f32 %v1052, %v1120
      %v1185 = vadd.f32 %v1061, %v1121
      %v1186 = vmul.f32 %v1154, %v1154
      %v1187 = vmul.f32 %v1155, %v1155
      %v1188 = vmul.f32 %v1156, %v1156
      %v1189 = vmul.f32 %v1157, %v1157
      %v1190 = vmul.f32 %v1158, %v1158
      %v1191 = vmul.f32 %v1159, %v1159
      %v1192 = vmul.f32 %v1160, %v1160
      %v1193 = vmul.f32 %v1161, %v1161
      %v1194 = vmul.f32 %v1162, %v1162
      %v1195 = vmul.f32 %v1163, %v1163
      %v1196 = vmul.f32 %v1164, %v1164
      %v1197 = vmul.f32 %v1165, %v1165
      %v1198 = vmul.f32 %v1166, %v1166
      %v1199 = vmul.f32 %v1167, %v1167
      %v1200 = vmul.f32 %v1168, %v1168
      %v1201 = vmul.f32 %v1169, %v1169
      %v1202 = vmul.f32 %v1170, %v1170
      %v1203 = vmul.f32 %v1171, %v1171
      %v1204 = vmul.f32 %v1172, %v1172
      %v1205 = vmul.f32 %v1173, %v1173
      %v1206 = vmul.f32 %v1174, %v1174
      %v1207 = vmul.f32 %v1175, %v1175
      %v1208 = vmul.f32 %v1176, %v1176
      %v1209 = vmul.f32 %v1177, %v1177
      %v1210 = vmul.f32 %v1178, %v1178
      %v1211 = vmul.f32 %v1179, %v1179
      %v1212 = vmul.f32 %v1180, %v1180
      %v1213 = vmul.f32 %v1181, %v1181
      %v1214 = vmul.f32 %v1182, %v1182
      %v1215 = vmul.f32 %v1183, %v1183
      %v1216 = vmul.f32 %v1184, %v1184
      %v1217 = vmul.f32 %v1185, %v1185
      %v1218 = vmul.f32 %v1154, %v1186
      %v1219 = vmul.f32 %v1155, %v1187
      %v1220 = vmul.f32 %v1156, %v1188
      %v1221 = vmul.f32 %v1157, %v1189
      %v1222 = vmul.f32 %v1158, %v1190
      %v1223 = vmul.f32 %v1159, %v1191
      %v1224 = vmul.f32 %v1160, %v1192
      %v1225 = vmul.f32 %v1161, %v1193
      %v1226 = vmul.f32 %v1162, %v1194
      %v1227 = vmul.f32 %v1163, %v1195
      %v1228 = vmul.f32 %v1164, %v1196
      %v1229 = vmul.f32 %v1165, %v1197
      %v1230 = vmul.f32 %v1166, %v1198
      %v1231 = vmul.f32 %v1167, %v1199
      %v1232 = vmul.f32 %v1168, %v1200
      %v1233 = vmul.f32 %v1169, %v1201
      %v1234 = vmul.f32 %v1170, %v1202
      %v1235 = vmul.f32 %v1171, %v1203
      %v1236 = vmul.f32 %v1172, %v1204
      %v1237 = vmul.f32 %v1173, %v1205
      %v1238 = vmul.f32 %v1174, %v1206
      %v1239 = vmul.f32 %v1175, %v1207
      %v1240 = vmul.f32 %v1176, %v1208
      %v1241 = vmul.f32 %v1177, %v1209
      %v1242 = vmul.f32 %v1178, %v1210
      %v1243 = vmul.f32 %v1179, %v1211
      %v1244 = vmul.f32 %v1180, %v1212
      %v1245 = vmul.f32 %v1181, %v1213
      %v1246 = vmul.f32 %v1182, %v1214
      %v1247 = vmul.f32 %v1183, %v1215
      %v1248 = vmul.f32 %v1184, %v1216
      %v1249 = vmul.f32 %v1185, %v1217
      %v1250 = vmul.f32 %v1218, 0.044715
      %v1251 = vmul.f32 %v1219, 0.044715
      %v1252 = vmul.f32 %v1220, 0.044715
      %v1253 = vmul.f32 %v1221, 0.044715
      %v1254 = vmul.f32 %v1222, 0.044715
      %v1255 = vmul.f32 %v1223, 0.044715
      %v1256 = vmul.f32 %v1224, 0.044715
      %v1257 = vmul.f32 %v1225, 0.044715
      %v1258 = vmul.f32 %v1226, 0.044715
      %v1259 = vmul.f32 %v1227, 0.044715
      %v1260 = vmul.f32 %v1228, 0.044715
      %v1261 = vmul.f32 %v1229, 0.044715
      %v1262 = vmul.f32 %v1230, 0.044715
      %v1263 = vmul.f32 %v1231, 0.044715
      %v1264 = vmul.f32 %v1232, 0.044715
      %v1265 = vmul.f32 %v1233, 0.044715
      %v1266 = vmul.f32 %v1234, 0.044715
      %v1267 = vmul.f32 %v1235, 0.044715
      %v1268 = vmul.f32 %v1236, 0.044715
      %v1269 = vmul.f32 %v1237, 0.044715
      %v1270 = vmul.f32 %v1238, 0.044715
      %v1271 = vmul.f32 %v1239, 0.044715
      %v1272 = vmul.f32 %v1240, 0.044715
      %v1273 = vmul.f32 %v1241, 0.044715
      %v1274 = vmul.f32 %v1242, 0.044715
      %v1275 = vmul.f32 %v1243, 0.044715
      %v1276 = vmul.f32 %v1244, 0.044715
      %v1277 = vmul.f32 %v1245, 0.044715
      %v1278 = vmul.f32 %v1246, 0.044715
      %v1279 = vmul.f32 %v1247, 0.044715
      %v1280 = vmul.f32 %v1248, 0.044715
      %v1281 = vmul.f32 %v1249, 0.044715
      %v1282 = vadd.f32 %v1154, %v1250
      %v1283 = vadd.f32 %v1155, %v1251
      %v1284 = vadd.f32 %v1156, %v1252
      %v1285 = vadd.f32 %v1157, %v1253
      %v1286 = vadd.f32 %v1158, %v1254
      %v1287 = vadd.f32 %v1159, %v1255
      %v1288 = vadd.f32 %v1160, %v1256
      %v1289 = vadd.f32 %v1161, %v1257
      %v1290 = vadd.f32 %v1162, %v1258
      %v1291 = vadd.f32 %v1163, %v1259
      %v1292 = vadd.f32 %v1164, %v1260
      %v1293 = vadd.f32 %v1165, %v1261
      %v1294 = vadd.f32 %v1166, %v1262
      %v1295 = vadd.f32 %v1167, %v1263
      %v1296 = vadd.f32 %v1168, %v1264
      %v1297 = vadd.f32 %v1169, %v1265
      %v1298 = vadd.f32 %v1170, %v1266
      %v1299 = vadd.f32 %v1171, %v1267
      %v1300 = vadd.f32 %v1172, %v1268
      %v1301 = vadd.f32 %v1173, %v1269
      %v1302 = vadd.f32 %v1174, %v1270
      %v1303 = vadd.f32 %v1175, %v1271
      %v1304 = vadd.f32 %v1176, %v1272
      %v1305 = vadd.f32 %v1177, %v1273
      %v1306 = vadd.f32 %v1178, %v1274
      %v1307 = vadd.f32 %v1179, %v1275
      %v1308 = vadd.f32 %v1180, %v1276
      %v1309 = vadd.f32 %v1181, %v1277
      %v1310 = vadd.f32 %v1182, %v1278
      %v1311 = vadd.f32 %v1183, %v1279
      %v1312 = vadd.f32 %v1184, %v1280
      %v1313 = vadd.f32 %v1185, %v1281
      %v1314 = vmul.f32 %v1282, 0.7978846
      %v1315 = vmul.f32 %v1283, 0.7978846
      %v1316 = vmul.f32 %v1284, 0.7978846
      %v1317 = vmul.f32 %v1285, 0.7978846
      %v1318 = vmul.f32 %v1286, 0.7978846
      %v1319 = vmul.f32 %v1287, 0.7978846
      %v1320 = vmul.f32 %v1288, 0.7978846
      %v1321 = vmul.f32 %v1289, 0.7978846
      %v1322 = vmul.f32 %v1290, 0.7978846
      %v1323 = vmul.f32 %v1291, 0.7978846
      %v1324 = vmul.f32 %v1292, 0.7978846
      %v1325 = vmul.f32 %v1293, 0.7978846
      %v1326 = vmul.f32 %v1294, 0.7978846
      %v1327 = vmul.f32 %v1295, 0.7978846
      %v1328 = vmul.f32 %v1296, 0.7978846
      %v1329 = vmul.f32 %v1297, 0.7978846
      %v1330 = vmul.f32 %v1298, 0.7978846
      %v1331 = vmul.f32 %v1299, 0.7978846
      %v1332 = vmul.f32 %v1300, 0.7978846
      %v1333 = vmul.f32 %v1301, 0.7978846
      %v1334 = vmul.f32 %v1302, 0.7978846
      %v1335 = vmul.f32 %v1303, 0.7978846
      %v1336 = vmul.f32 %v1304, 0.7978846
      %v1337 = vmul.f32 %v1305, 0.7978846
      %v1338 = vmul.f32 %v1306, 0.7978846
      %v1339 = vmul.f32 %v1307, 0.7978846
      %v1340 = vmul.f32 %v1308, 0.7978846
      %v1341 = vmul.f32 %v1309, 0.7978846
      %v1342 = vmul.f32 %v1310, 0.7978846
      %v1343 = vmul.f32 %v1311, 0.7978846
      %v1344 = vmul.f32 %v1312, 0.7978846
      %v1345 = vmul.f32 %v1313, 0.7978846
      %v1346 = vtanh.pop %v1314
      %v1347 = vtanh.pop %v1315
      %v1348 = vtanh.pop %v1316
      %v1349 = vtanh.pop %v1317
      %v1350 = vtanh.pop %v1318
      %v1351 = vtanh.pop %v1319
      %v1352 = vtanh.pop %v1320
      %v1353 = vtanh.pop %v1321
      %v1354 = vtanh.pop %v1322
      %v1355 = vtanh.pop %v1323
      %v1356 = vtanh.pop %v1324
      %v1357 = vtanh.pop %v1325
      %v1358 = vtanh.pop %v1326
      %v1359 = vtanh.pop %v1327
      %v1360 = vtanh.pop %v1328
      %v1361 = vtanh.pop %v1329
      %v1362 = vtanh.pop %v1330
      %v1363 = vtanh.pop %v1331
      %v1364 = vtanh.pop %v1332
      %v1365 = vtanh.pop %v1333
      %v1366 = vtanh.pop %v1334
      %v1367 = vtanh.pop %v1335
      %v1368 = vtanh.pop %v1336
      %v1369 = vtanh.pop %v1337
      %v1370 = vtanh.pop %v1338
      %v1371 = vtanh.pop %v1339
      %v1372 = vtanh.pop %v1340
      %v1373 = vtanh.pop %v1341
      %v1374 = vtanh.pop %v1342
      %v1375 = vtanh.pop %v1343
      %v1376 = vtanh.pop %v1344
      %v1377 = vtanh.pop %v1345
      %v1378 = vadd.f32 %v1346, 1.0
      %v1379 = vadd.f32 %v1347, 1.0
      %v1380 = vadd.f32 %v1348, 1.0
      %v1381 = vadd.f32 %v1349, 1.0
      %v1382 = vadd.f32 %v1350, 1.0
      %v1383 = vadd.f32 %v1351, 1.0
      %v1384 = vadd.f32 %v1352, 1.0
      %v1385 = vadd.f32 %v1353, 1.0
      %v1386 = vadd.f32 %v1354, 1.0
      %v1387 = vadd.f32 %v1355, 1.0
      %v1388 = vadd.f32 %v1356, 1.0
      %v1389 = vadd.f32 %v1357, 1.0
      %v1390 = vadd.f32 %v1358, 1.0
      %v1391 = vadd.f32 %v1359, 1.0
      %v1392 = vadd.f32 %v1360, 1.0
      %v1393 = vadd.f32 %v1361, 1.0
      %v1394 = vadd.f32 %v1362, 1.0
      %v1395 = vadd.f32 %v1363, 1.0
      %v1396 = vadd.f32 %v1364, 1.0
      %v1397 = vadd.f32 %v1365, 1.0
      %v1398 = vadd.f32 %v1366, 1.0
      %v1399 = vadd.f32 %v1367, 1.0
      %v1400 = vadd.f32 %v1368, 1.0
      %v1401 = vadd.f32 %v1369, 1.0
      %v1402 = vadd.f32 %v1370, 1.0
      %v1403 = vadd.f32 %v1371, 1.0
      %v1404 = vadd.f32 %v1372, 1.0
      %v1405 = vadd.f32 %v1373, 1.0
      %v1406 = vadd.f32 %v1374, 1.0
      %v1407 = vadd.f32 %v1375, 1.0
      %v1408 = vadd.f32 %v1376, 1.0
      %v1409 = vadd.f32 %v1377, 1.0
      %v1410 = vmul.f32 %v1378, 0.5
      %v1411 = vmul.f32 %v1379, 0.5
      %v1412 = vmul.f32 %v1380, 0.5
      %v1413 = vmul.f32 %v1381, 0.5
      %v1414 = vmul.f32 %v1382, 0.5
      %v1415 = vmul.f32 %v1383, 0.5
      %v1416 = vmul.f32 %v1384, 0.5
      %v1417 = vmul.f32 %v1385, 0.5
      %v1418 = vmul.f32 %v1386, 0.5
      %v1419 = vmul.f32 %v1387, 0.5
      %v1420 = vmul.f32 %v1388, 0.5
      %v1421 = vmul.f32 %v1389, 0.5
      %v1422 = vmul.f32 %v1390, 0.5
      %v1423 = vmul.f32 %v1391, 0.5
      %v1424 = vmul.f32 %v1392, 0.5
      %v1425 = vmul.f32 %v1393, 0.5
      %v1426 = vmul.f32 %v1394, 0.5
      %v1427 = vmul.f32 %v1395, 0.5
      %v1428 = vmul.f32 %v1396, 0.5
      %v1429 = vmul.f32 %v1397, 0.5
      %v1430 = vmul.f32 %v1398, 0.5
      %v1431 = vmul.f32 %v1399, 0.5
      %v1432 = vmul.f32 %v1400, 0.5
      %v1433 = vmul.f32 %v1401, 0.5
      %v1434 = vmul.f32 %v1402, 0.5
      %v1435 = vmul.f32 %v1403, 0.5
      %v1436 = vmul.f32 %v1404, 0.5
      %v1437 = vmul.f32 %v1405, 0.5
      %v1438 = vmul.f32 %v1406, 0.5
      %v1439 = vmul.f32 %v1407, 0.5
      %v1440 = vmul.f32 %v1408, 0.5
      %v1441 = vmul.f32 %v1409, 0.5
      %v1442 = vmul.f32 %v1154, %v1410
      %v1443 = vmul.f32 %v1155, %v1411
      %v1444 = vmul.f32 %v1156, %v1412
      %v1445 = vmul.f32 %v1157, %v1413
      %v1446 = vmul.f32 %v1158, %v1414
      %v1447 = vmul.f32 %v1159, %v1415
      %v1448 = vmul.f32 %v1160, %v1416
      %v1449 = vmul.f32 %v1161, %v1417
      %v1450 = vmul.f32 %v1162, %v1418
      %v1451 = vmul.f32 %v1163, %v1419
      %v1452 = vmul.f32 %v1164, %v1420
      %v1453 = vmul.f32 %v1165, %v1421
      %v1454 = vmul.f32 %v1166, %v1422
      %v1455 = vmul.f32 %v1167, %v1423
      %v1456 = vmul.f32 %v1168, %v1424
      %v1457 = vmul.f32 %v1169, %v1425
      %v1458 = vmul.f32 %v1170, %v1426
      %v1459 = vmul.f32 %v1171, %v1427
      %v1460 = vmul.f32 %v1172, %v1428
      %v1461 = vmul.f32 %v1173, %v1429
      %v1462 = vmul.f32 %v1174, %v1430
      %v1463 = vmul.f32 %v1175, %v1431
      %v1464 = vmul.f32 %v1176, %v1432
      %v1465 = vmul.f32 %v1177, %v1433
      %v1466 = vmul.f32 %v1178, %v1434
      %v1467 = vmul.f32 %v1179, %v1435
      %v1468 = vmul.f32 %v1180, %v1436
      %v1469 = vmul.f32 %v1181, %v1437
      %v1470 = vmul.f32 %v1182, %v1438
      %v1471 = vmul.f32 %v1183, %v1439
      %v1472 = vmul.f32 %v1184, %v1440
      %v1473 = vmul.f32 %v1185, %v1441
      %v1474 = vld [vmem:[%s3] sm:$0xff]
      %v1475 = vld [vmem:[%s3 + $0x8] sm:$0xff]
      %v1476 = vld [vmem:[%s3 + $0x10] sm:$0xff]
      %v1477 = vld [vmem:[%s3 + $0x18] sm:$0xff]
      %v1478 = vld [vmem:[%s3 + $0x20] sm:$0xff]
      %v1479 = vld [vmem:[%s3 + $0x28] sm:$0xff]
      %v1480 = vld [vmem:[%s3 + $0x30] sm:$0xff]
      %v1481 = vld [vmem:[%s3 + $0x38] sm:$0xff]
      %v1482 = vld [vmem:[%s4] sm:$0xff]
      %v1483 = vld [vmem:[%s4 + $0x8] sm:$0xff]
      %v1484 = vld [vmem:[%s4 + $0x10] sm:$0xff]
      %v1485 = vld [vmem:[%s4 + $0x18] sm:$0xff]
      %v1486 = vld [vmem:[%s4 + $0x20] sm:$0xff]
      %v1487 = vld [vmem:[%s4 + $0x28] sm:$0xff]
      %v1488 = vld [vmem:[%s4 + $0x30] sm:$0xff]
      %v1489 = vld [vmem:[%s4 + $0x38] sm:$0xff]
      %1491 = vset.pattern.permute.xlu0 0
      %1492 = vperm.xlu0 %1491, %v1482
      %v1493 = vpop.permute.xlu0 %1492
      %1496 = vset.pattern.permute.xlu0 0
      %1497 = vperm.xlu0 %1496, %v1483
      %v1498 = vpop.permute.xlu0 %1497
      %1501 = vset.pattern.permute.xlu0 0
      %1502 = vperm.xlu0 %1501, %v1484
      %v1503 = vpop.permute.xlu0 %1502
      %1506 = vset.pattern.permute.xlu0 0
      %1507 = vperm.xlu0 %1506, %v1485
      %v1508 = vpop.permute.xlu0 %1507
      %1511 = vset.pattern.permute.xlu0 0
      %1512 = vperm.xlu0 %1511, %v1486
      %v1513 = vpop.permute.xlu0 %1512
      %1516 = vset.pattern.permute.xlu0 0
      %1517 = vperm.xlu0 %1516, %v1487
      %v1518 = vpop.permute.xlu0 %1517
      %1521 = vset.pattern.permute.xlu0 0
      %1522 = vperm.xlu0 %1521, %v1488
      %v1523 = vpop.permute.xlu0 %1522
      %1526 = vset.pattern.permute.xlu0 0
      %1527 = vperm.xlu0 %1526, %v1489
      %v1528 = vpop.permute.xlu0 %1527
      %v1562 = vrot.slane %v1443, 7
      %vm1563 = vcmask 1041409
      %v1564 = vsel %vm1563, %v1562, %v1442
      %v1565 = vrot.slane %v1444, 6
      %vm1566 = vcmask 1042434
      %v1567 = vsel %vm1566, %v1565, %v1564
      %v1568 = vrot.slane %v1445, 5
      %vm1569 = vcmask 1043459
      %v1570 = vsel %vm1569, %v1568, %v1567
      %v1571 = vrot.slane %v1446, 4
      %vm1572 = vcmask 1044484
      %v1573 = vsel %vm1572, %v1571, %v1570
      %v1574 = vrot.slane %v1447, 3
      %vm1575 = vcmask 1045509
      %v1576 = vsel %vm1575, %v1574, %v1573
      %v1577 = vrot.slane %v1448, 2
      %vm1578 = vcmask 1046534
      %v1579 = vsel %vm1578, %v1577, %v1576
      %v1580 = vrot.slane %v1449, 1
      %vm1581 = vcmask 1047559
      %v1582 = vsel %vm1581, %v1580, %v1579
      %v1583 = vrot.slane %v1451, 7
      %v1584 = vsel %vm1563, %v1583, %v1450
      %v1585 = vrot.slane %v1452, 6
      %v1586 = vsel %vm1566, %v1585, %v1584
      %v1587 = vrot.slane %v1453, 5
      %v1588 = vsel %vm1569, %v1587, %v1586
      %v1589 = vrot.slane %v1454, 4
      %v1590 = vsel %vm1572, %v1589, %v1588
      %v1591 = vrot.slane %v1455, 3
      %v1592 = vsel %vm1575, %v1591, %v1590
      %v1593 = vrot.slane %v1456, 2
      %v1594 = vsel %vm1578, %v1593, %v1592
      %v1595 = vrot.slane %v1457, 1
      %v1596 = vsel %vm1581, %v1595, %v1594
      %v1597 = vrot.slane %v1459, 7
      %v1598 = vsel %vm1563, %v1597, %v1458
      %v1599 = vrot.slane %v1460, 6
      %v1600 = vsel %vm1566, %v1599, %v1598
      %v1601 = vrot.slane %v1461, 5
      %v1602 = vsel %vm1569, %v1601, %v1600
      %v1603 = vrot.slane %v1462, 4
      %v1604 = vsel %vm1572, %v1603, %v1602
      %v1605 = vrot.slane %v1463, 3
      %v1606 = vsel %vm1575, %v1605, %v1604
      %v1607 = vrot.slane %v1464, 2
      %v1608 = vsel %vm1578, %v1607, %v1606
      %v1609 = vrot.slane %v1465, 1
      %v1610 = vsel %vm1581, %v1609, %v1608
      %v1611 = vrot.slane %v1467, 7
      %v1612 = vsel %vm1563, %v1611, %v1466
      %v1613 = vrot.slane %v1468, 6
      %v1614 = vsel %vm1566, %v1613, %v1612
      %v1615 = vrot.slane %v1469, 5
      %v1616 = vsel %vm1569, %v1615, %v1614
      %v1617 = vrot.slane %v1470, 4
      %v1618 = vsel %vm1572, %v1617, %v1616
      %v1619 = vrot.slane %v1471, 3
      %v1620 = vsel %vm1575, %v1619, %v1618
      %v1621 = vrot.slane %v1472, 2
      %v1622 = vsel %vm1578, %v1621, %v1620
      %v1623 = vrot.slane %v1473, 1
      %v1624 = vsel %vm1581, %v1623, %v1622
      %vm1629 = vcmask 261120
      %v1631 = vsel %vm1629, %v1474, 0
      %v1634 = vsel %vm1629, %v1475, 0
      %v1637 = vsel %vm1629, %v1476, 0
      %v1640 = vsel %vm1629, %v1477, 0
      %v1643 = vsel %vm1629, %v1478, 0
      %v1646 = vsel %vm1629, %v1479, 0
      %v1649 = vsel %vm1629, %v1480, 0
      %v1652 = vsel %vm1629, %v1481, 0
      %1654 = vmatpush.msra.mxu0 0.0
      %1655 = vmatpush.msra.mxu0 0.0
      %1656 = vmatpush.msra.mxu0 0.0
      %1657 = vmatpush.msra.mxu0 0.0
      %1658 = vmatpush.msra.mxu0 0.0
      %1659 = vmatpush.msra.mxu0 0.0
      %1660 = vmatpush.msra.mxu0 0.0
      %1661 = vmatpush.msra.mxu0 0.0
      %1662 = vmatpush.msra.mxu0 0.0
      %1663 = vmatpush.msra.mxu0 0.0
      %1664 = vmatpush.msra.mxu0 0.0
      %1665 = vmatpush.msra.mxu0 0.0
      %1666 = vmatpush.msra.mxu0 %v1624
      %1667 = vmatpush.msra.mxu0 %v1610
      %1668 = vmatpush.msra.mxu0 %v1596
      %1669 = vmatpush.msra.mxu0 %v1582
      %1670 = vmatmul.f32.gmra.mxu0 %v1631
      %v1671 = vpop.f32.mrf.mxu0
      %v1672 = vadd.f32 %v1493, %v1671
      %1673 = vmatmul.f32.gmra.mxu0 %v1634
      %v1674 = vpop.f32.mrf.mxu0
      %v1675 = vadd.f32 %v1498, %v1674
      %1676 = vmatmul.f32.gmra.mxu0 %v1637
      %v1677 = vpop.f32.mrf.mxu0
      %v1678 = vadd.f32 %v1503, %v1677
      %1679 = vmatmul.f32.gmra.mxu0 %v1640
      %v1680 = vpop.f32.mrf.mxu0
      %v1681 = vadd.f32 %v1508, %v1680
      %1682 = vmatmul.f32.gmra.mxu0 %v1643
      %v1683 = vpop.f32.mrf.mxu0
      %v1684 = vadd.f32 %v1513, %v1683
      %1685 = vmatmul.f32.gmra.mxu0 %v1646
      %v1686 = vpop.f32.mrf.mxu0
      %v1687 = vadd.f32 %v1518, %v1686
      %1688 = vmatmul.f32.gmra.mxu0 %v1649
      %v1689 = vpop.f32.mrf.mxu0
      %v1690 = vadd.f32 %v1523, %v1689
      %1691 = vmatmul.f32.gmra.mxu0 %v1652
      %v1692 = vpop.f32.mrf.mxu0
      %v1693 = vadd.f32 %v1528, %v1692
      %1694 = vdwg.mxu0
      %v1695 = vxor.u32 %v1684, 2147483648
      %v1696 = vxor.u32 %v1687, 2147483648
      %v1697 = vxor.u32 %v1690, 2147483648
      %v1698 = vxor.u32 %v1693, 2147483648
      %v1699 = vmul.f32 %v1695, 1.442695
      %v1700 = vpow.pop %v1699
      %v1701 = vmul.f32 %v1696, 1.442695
      %v1702 = vpow.pop %v1701
      %v1703 = vmul.f32 %v1697, 1.442695
      %v1704 = vpow.pop %v1703
      %v1705 = vmul.f32 %v1698, 1.442695
      %v1706 = vpow.pop %v1705
      %v1707 = vadd.f32 %v1700, 1.0
      %v1708 = vadd.f32 %v1702, 1.0
      %v1709 = vadd.f32 %v1704, 1.0
      %v1710 = vadd.f32 %v1706, 1.0
      %v1711 = vrcp.pop %v1707
      %v1712 = vmul.f32 %v1707, %v1711
      %v1713 = vsub.f32 1.0, %v1712
      %v1714 = vmul.f32 %v1711, %v1713
      %v1715 = vadd.f32 %v1711, %v1714
      %vm1716 = vweird.f32 %v1707
      %vm1717 = vweird.f32 %v1711
      %vm1718 = vmor %vm1716, %vm1717
      %v1719 = vsel %vm1718, %v1711, %v1715
      %v1720 = vand.u32 2147483647, %v1707
      %vm1721 = vcmp.eq.f32.partialorder %v1720, 8.507059e+37
      %v1722 = vand.u32 %v1707, 2147483648
      %v1723 = vor.u32 1.1754944e-38, %v1722
      %v1724 = vsel %vm1721, %v1723, %v1719
      %v1725 = vmul.f32 1.0, %v1724
      %v1726 = vrcp.pop %v1708
      %v1727 = vmul.f32 %v1708, %v1726
      %v1728 = vsub.f32 1.0, %v1727
      %v1729 = vmul.f32 %v1726, %v1728
      %v1730 = vadd.f32 %v1726, %v1729
      %vm1731 = vweird.f32 %v1708
      %vm1732 = vweird.f32 %v1726
      %vm1733 = vmor %vm1731, %vm1732
      %v1734 = vsel %vm1733, %v1726, %v1730
      %v1735 = vand.u32 2147483647, %v1708
      %vm1736 = vcmp.eq.f32.partialorder %v1735, 8.507059e+37
      %v1737 = vand.u32 %v1708, 2147483648
      %v1738 = vor.u32 1.1754944e-38, %v1737
      %v1739 = vsel %vm1736, %v1738, %v1734
      %v1740 = vmul.f32 1.0, %v1739
      %v1741 = vrcp.pop %v1709
      %v1742 = vmul.f32 %v1709, %v1741
      %v1743 = vsub.f32 1.0, %v1742
      %v1744 = vmul.f32 %v1741, %v1743
      %v1745 = vadd.f32 %v1741, %v1744
      %vm1746 = vweird.f32 %v1709
      %vm1747 = vweird.f32 %v1741
      %vm1748 = vmor %vm1746, %vm1747
      %v1749 = vsel %vm1748, %v1741, %v1745
      %v1750 = vand.u32 2147483647, %v1709
      %vm1751 = vcmp.eq.f32.partialorder %v1750, 8.507059e+37
      %v1752 = vand.u32 %v1709, 2147483648
      %v1753 = vor.u32 1.1754944e-38, %v1752
      %v1754 = vsel %vm1751, %v1753, %v1749
      %v1755 = vmul.f32 1.0, %v1754
      %v1756 = vrcp.pop %v1710
      %v1757 = vmul.f32 %v1710, %v1756
      %v1758 = vsub.f32 1.0, %v1757
      %v1759 = vmul.f32 %v1756, %v1758
      %v1760 = vadd.f32 %v1756, %v1759
      %vm1761 = vweird.f32 %v1710
      %vm1762 = vweird.f32 %v1756
      %vm1763 = vmor %vm1761, %vm1762
      %v1764 = vsel %vm1763, %v1756, %v1760
      %v1765 = vand.u32 2147483647, %v1710
      %vm1766 = vcmp.eq.f32.partialorder %v1765, 8.507059e+37
      %v1767 = vand.u32 %v1710, 2147483648
      %v1768 = vor.u32 1.1754944e-38, %v1767
      %v1769 = vsel %vm1766, %v1768, %v1764
      %v1770 = vmul.f32 1.0, %v1769
      %v1771 = vmul.f32 %v1672, %v1725
      %v1772 = vmul.f32 %v1675, %v1740
      %v1773 = vmul.f32 %v1678, %v1755
      %v1774 = vmul.f32 %v1681, %v1770
      %1775 = vst.msk [vmem:[%s224] sm:$0xff] %vm773, %v1771
      %1776 = vst.msk [vmem:[%s224 + $0x8] sm:$0xff] %vm773, %v1772
      %1777 = vst.msk [vmem:[%s224 + $0x10] sm:$0xff] %vm773, %v1773
      %1778 = vst.msk [vmem:[%s224 + $0x18] sm:$0xff] %vm773, %v1774
      %p1779 = scmp.lt.s32.totalorder %s16, 1
      %s1780 = scalar_select %p1779, %s16, 1
      %s1781 = smul.addr %s1780, 4
      %s1782 = smul.addr %s1781, 8
      %s1783 = scalar_lea.vmem %s5, %s1782
      // Predicated region
      $region41: #{tpu_custom_call.1} parent=39 // pred_check
        %p1784 = pneg %p144
      $region42: #{tpu_custom_call.1} parent=39 // pred_check_branch
        %1786 = sbr.rel (%p1784) target = $region44
      $region43: #{tpu_custom_call.1} parent=39 // pred_region
        _
      $region44: #{tpu_custom_call.1} parent=39 // pred_fallthru
        _
    $region40: #{tpu_custom_call.1} parent=5 // pred_fallthru
      _
    %p1787 = scmp.le.s32.totalorder 2, %s11
    // Predicated region
    $region45: #{tpu_custom_call.1} parent=5 // pred_check
      %p1788 = pneg %p1787
    $region46: #{tpu_custom_call.1} parent=5 // pred_check_branch
      %1790 = sbr.rel (%p1788) target = $region48
    $region47: #{tpu_custom_call.1} parent=5 // pred_region
      %s1791 = ssub.s32 %s11, 2
      // Predicated region
      $region49: #{tpu_custom_call.1} parent=47 // pred_check
        %p1792 = pneg %p150
      $region50: #{tpu_custom_call.1} parent=47 // pred_check_branch
        %1794 = sbr.rel (%p1792) target = $region52
      $region51: #{tpu_custom_call.1} parent=47 // pred_region
        %p1795 = scmp.lt.s32.totalorder %s17, 1
        %s1796 = scalar_select %p1795, %s17, 1
        %s1797 = smul.addr %s1796, 4
        %s1798 = smul.addr %s1797, 8
        %s1799 = scalar_lea.vmem %s5, %s1798
      $region52: #{tpu_custom_call.1} parent=47 // pred_fallthru
        _
    $region48: #{tpu_custom_call.1} parent=5 // pred_fallthru
      _
  $region6: #{tpu_custom_call.1} parent=0 // loop_footer
    %s15 = sadd.s32 1, %s11
  $region7: #{tpu_custom_call.1} parent=0 // loop_footer_branch
    %10 = sbr.rel target = $region3
  $region8: #{tpu_custom_call.1} parent=0 // loop_exit
    _

</llo_original>
